<compile_context>
chip_gen: v7x
topology: tpu7x:2x2x1
jax: 0.10.0
libtpu: 0.0.40
codegen_flags: <defaults>
</compile_context>

<pallas_src>
import jax
import jax.numpy as jnp
from jax import lax
from jax.experimental import pallas as pl
from jax.experimental.pallas import tpu as pltpu


# ----------------------------- problem sizes ------------------------------ #
B = 2            # batch
C_IN = 4         # input_dim
C_HID = 32       # hidden_dim
H = 16
W = 16
KH, KW = 3, 3    # kernel_size
USE_BIAS = True

C_CAT = C_IN + C_HID          # 36  channels of cat([x, h], dim=1)
C_OUT = 4 * C_HID             # 128 conv output channels (i, f, o, g)
PH, PW = KH // 2, KW // 2
K_IM2COL = C_CAT * KH * KW    # 324 fused contraction depth, ordered (c_cat, ki, kj)
NB = B * H * W                # 512 lane dim (batch fused into spatial)


def _pick_n_split():
    """Split the lane axis only where it maps to real hardware parallelism.

    v5e / v6e have a single TensorCore: the 2-step grid only adds ~0.35 us of
    pipeline overhead there, so collapse to grid=(1,).  On v7x (2 TCs) and
    megacore chips the "parallel" split halves per-core DMA + EUP work.
    """
    try:
        kind = jax.devices()[0].device_kind.lower()
    except Exception:
        return 2
    single_tc_markers = ("v5 lite", "v5e", "v5litepod", "v6 lite", "v6e", "v6")
    if any(m in kind for m in single_tc_markers):
        return 1
    return 2


N_SPLIT = _pick_n_split()
TN = NB // N_SPLIT            # 512 (single-TC chips) or 256 (v7x) lanes per step


# ------------------------------ Pallas kernel ------------------------------ #
def convlstm_kernel(patch_ref, w_ref, b_ref, c_ref, h_out_ref, c_out_ref):
    """Channel-major ConvLSTM cell step on one lane-tile.

    patch_ref : (K_IM2COL, TN)  im2col'd cat([x, h]); K order = (c_cat, ki, kj)
    w_ref     : (C_OUT, K_IM2COL)   resident across the grid
    b_ref     : (C_OUT, 1)          resident across the grid
    c_ref     : (C_HID, TN)     current cell state, channel-major
    h_out_ref / c_out_ref : (C_HID, TN)   (c_out aliases the c input buffer)
    """
    # Entire "same" conv for this tile as one MXU matmul, bias folded in.
    cc = jnp.dot(w_ref[...], patch_ref[...],
                 preferred_element_type=jnp.float32) + b_ref[...]

    # Gate split = 8-aligned sublane slices (torch.split order: i, f, o, g).
    ifo = jax.nn.sigmoid(cc[0:3 * C_HID, :])     # one EUP pass over i|f|o
    g = jnp.tanh(cc[3 * C_HID:, :])
    i = ifo[0:C_HID, :]
    f = ifo[C_HID:2 * C_HID, :]
    o = ifo[2 * C_HID:, :]

    c_next = f * c_ref[...] + i * g
    h_next = o * jnp.tanh(c_next)

    c_out_ref[...] = c_next.astype(c_out_ref.dtype)
    h_out_ref[...] = h_next.astype(h_out_ref.dtype)


# ------------------------------ JAX wrapper -------------------------------- #
@jax.jit
def convlstm_cell(x_nchw, h_nchw, c_nchw, w_oihw, bias):
    """Mirrors ConvLSTMCell.forward. Inputs in PyTorch NCHW / OIHW layout."""
    # Channel-major cat([x, h]) (small ~73 KB relayout), then SAME-pad spatial.
    x_cm = jnp.transpose(x_nchw, (1, 0, 2, 3))                    # (C_IN,  B, H, W)
    h_cm_in = jnp.transpose(h_nchw, (1, 0, 2, 3))                 # (C_HID, B, H, W)
    combined = jnp.concatenate([x_cm, h_cm_in], axis=0)           # (C_CAT, B, H, W)
    padded = jnp.pad(combined, ((0, 0), (0, 0), (PH, PH), (PW, PW)))

    # im2col with K ordered (c_cat, ki, kj) and lanes ordered (b, y, x): the 9
    # taps are stacked on axis=1 so the reshape below is layout-free — no
    # transpose of the 9x-inflated (~663 KB) patch.
    taps = [padded[:, :, ki:ki + H, kj:kj + W]
            for ki in range(KH) for kj in range(KW)]
    patch = jnp.stack(taps, axis=1).reshape(K_IM2COL, NB)         # (324, 512)

    # OIHW already matches the (c_cat, ki, kj) K ordering: pure reshape.
    w_flat = w_oihw.reshape(C_OUT, K_IM2COL)
    b_col = bias.reshape(C_OUT, 1)

    # Cell state channel-major, lane-dense: (C_HID, B*H*W).
    c_cm = jnp.transpose(c_nchw, (1, 0, 2, 3)).reshape(C_HID, NB)

    h_cm, c_cm_next = pl.pallas_call(
        convlstm_kernel,
        out_shape=(
            jax.ShapeDtypeStruct((C_HID, NB), jnp.float32),
            jax.ShapeDtypeStruct((C_HID, NB), jnp.float32),
        ),
        grid_spec=pltpu.PrefetchScalarGridSpec(
            num_scalar_prefetch=0,
            grid=(N_SPLIT,),
            in_specs=[
                pl.BlockSpec((K_IM2COL, TN), lambda m: (0, m)),
                pl.BlockSpec((C_OUT, K_IM2COL), lambda m: (0, 0)),  # resident
                pl.BlockSpec((C_OUT, 1), lambda m: (0, 0)),         # resident
                pl.BlockSpec((C_HID, TN), lambda m: (0, m)),
            ],
            out_specs=[
                pl.BlockSpec((C_HID, TN), lambda m: (0, m)),
                pl.BlockSpec((C_HID, TN), lambda m: (0, m)),
            ],
        ),
        # c-state input buffer is reused in place for the c_next output.
        input_output_aliases={3: 1},
        compiler_params=pltpu.CompilerParams(
            dimension_semantics=("parallel",),   # real 2-way split on v7x only
        ),
    )(patch, w_flat, b_col, c_cm)

    # Back to PyTorch NCHW output convention.
    h_next = jnp.transpose(h_cm.reshape(C_HID, B, H, W), (1, 0, 2, 3))
    c_next = jnp.transpose(c_cm_next.reshape(C_HID, B, H, W), (1, 0, 2, 3))
    return h_next, c_next
    # TODO(synk): for a multi-timestep ConvLSTM, fuse the time loop into one
    # pallas_call (grid=(T,), "arbitrary") keeping h/c in VMEM scratch and
    # w_flat/b_col resident, streaming only the precomputed x-tap columns —
    # amortizes launch, NCHW glue, im2col and weight DMA over the sequence.


# ----------------------- pure-JAX reference (check) ------------------------ #
def convlstm_cell_ref(x_nchw, h_nchw, c_nchw, w_oihw, bias):
    combined = jnp.concatenate([x_nchw, h_nchw], axis=1)          # NCHW
    cc = lax.conv_general_dilated(
        combined, w_oihw,
        window_strides=(1, 1), padding="SAME",
        dimension_numbers=("NCHW", "OIHW", "NCHW"),
    ) + bias.reshape(1, C_OUT, 1, 1)
    cc_i, cc_f, cc_o, cc_g = jnp.split(cc, 4, axis=1)
    i = jax.nn.sigmoid(cc_i)
    f = jax.nn.sigmoid(cc_f)
    o = jax.nn.sigmoid(cc_o)
    g = jnp.tanh(cc_g)
    c_next = f * c_nchw + i * g
    h_next = o * jnp.tanh(c_next)
    return h_next, c_next


# ---------------------------------- main ----------------------------------- #
if __name__ == "__main__":
    key = jax.random.PRNGKey(0)
    kx, kh, kc, kw, kb = jax.random.split(key, 5)

    # PyTorch-convention shapes (NCHW / OIHW), deterministic init.
    x = jax.random.normal(kx, (B, C_IN, H, W), dtype=jnp.float32)
    h0 = jax.random.normal(kh, (B, C_HID, H, W), dtype=jnp.float32)
    c0 = jax.random.normal(kc, (B, C_HID, H, W), dtype=jnp.float32)

    fan_in = C_CAT * KH * KW
    bound = 1.0 / (fan_in ** 0.5)
    w = jax.random.uniform(kw, (C_OUT, C_CAT, KH, KW),
                           minval=-bound, maxval=bound, dtype=jnp.float32)
    if USE_BIAS:
        b = jax.random.uniform(kb, (C_OUT,),
                               minval=-bound, maxval=bound, dtype=jnp.float32)
    else:
        b = jnp.zeros((C_OUT,), dtype=jnp.float32)

    h_next, c_next = convlstm_cell(x, h0, c0, w, b)
    jax.block_until_ready((h_next, c_next))

    h_ref, c_ref = convlstm_cell_ref(x, h0, c0, w, b)
    assert h_next.shape == (B, C_HID, H, W) and c_next.shape == (B, C_HID, H, W)
    assert jnp.allclose(h_next, h_ref, rtol=1e-3, atol=1e-3)
    assert jnp.allclose(c_next, c_ref, rtol=1e-3, atol=1e-3)

    print("KERNEL_OK")
</pallas_src>

<mosaic_0001>
module attributes {stable_mosaic.version = 11 : i64} {
  func.func @convlstm_kernel(%arg0: i32, %arg1: memref<324x256xf32, #tpu.memory_space<vmem>>, %arg2: memref<128x324xf32, #tpu.memory_space<vmem>>, %arg3: memref<128x1xf32, #tpu.memory_space<vmem>>, %arg4: memref<32x256xf32, #tpu.memory_space<vmem>>, %arg5: memref<32x256xf32, #tpu.memory_space<vmem>>, %arg6: memref<32x256xf32, #tpu.memory_space<vmem>>) attributes {dimension_semantics = [#tpu.dimension_semantics<parallel>], iteration_bounds = array<i64: 2>, scalar_prefetch = 0 : i64, scratch_operands = 0 : i64, tpu.core_type = #tpu.core_type<tc>, window_params = [{transform_indices = @transform_0, window_bounds = array<i64: 324, 256>}, {pipeline_mode = #tpu.pipeline_mode<synchronous>, transform_indices = @transform_1, window_bounds = array<i64: 128, 324>}, {pipeline_mode = #tpu.pipeline_mode<synchronous>, transform_indices = @transform_2, window_bounds = array<i64: 128, 1>}, {transform_indices = @transform_3, window_bounds = array<i64: 32, 256>}, {transform_indices = @transform_4, window_bounds = array<i64: 32, 256>}, {transform_indices = @transform_5, window_bounds = array<i64: 32, 256>}]} {
    %c0 = arith.constant 0 : index
    %c0_0 = arith.constant 0 : index
    %0 = vector.load %arg2[%c0, %c0_0] : memref<128x324xf32, #tpu.memory_space<vmem>>, vector<128x324xf32>
    %c0_1 = arith.constant 0 : index
    %c0_2 = arith.constant 0 : index
    %1 = vector.load %arg1[%c0_1, %c0_2] : memref<324x256xf32, #tpu.memory_space<vmem>>, vector<324x256xf32>
    %cst = arith.constant dense<0.000000e+00> : vector<128x256xf32>
    %2 = tpu.matmul %0, %1, %cst {dimension_numbers = #tpu.dot_dimension_numbers<[1], [0], [0], [1], [0, 0, 1, 1], [], []>} : vector<128x324xf32>, vector<324x256xf32>, vector<128x256xf32> -> vector<128x256xf32>
    %c0_3 = arith.constant 0 : index
    %c0_4 = arith.constant 0 : index
    %3 = vector.load %arg3[%c0_3, %c0_4] : memref<128x1xf32, #tpu.memory_space<vmem>>, vector<128x1xf32>
    %4 = vector.broadcast %3 : vector<128x1xf32> to vector<128x256xf32>
    %5 = arith.addf %2, %4 : vector<128x256xf32>
    %6 = vector.extract_strided_slice %5 {offsets = [0, 0], sizes = [96, 256], strides = [1, 1]} : vector<128x256xf32> to vector<96x256xf32>
    %7 = arith.negf %6 : vector<96x256xf32>
    %8 = math.exp %7 : vector<96x256xf32>
    %cst_5 = arith.constant 1.000000e+00 : f32
    %9 = vector.broadcast %cst_5 : f32 to vector<96x256xf32>
    %10 = arith.addf %9, %8 : vector<96x256xf32>
    %11 = arith.divf %9, %10 : vector<96x256xf32>
    %12 = vector.extract_strided_slice %5 {offsets = [96, 0], sizes = [32, 256], strides = [1, 1]} : vector<128x256xf32> to vector<32x256xf32>
    %13 = math.tanh %12 : vector<32x256xf32>
    %14 = vector.extract_strided_slice %11 {offsets = [0, 0], sizes = [32, 256], strides = [1, 1]} : vector<96x256xf32> to vector<32x256xf32>
    %15 = vector.extract_strided_slice %11 {offsets = [32, 0], sizes = [32, 256], strides = [1, 1]} : vector<96x256xf32> to vector<32x256xf32>
    %16 = vector.extract_strided_slice %11 {offsets = [64, 0], sizes = [32, 256], strides = [1, 1]} : vector<96x256xf32> to vector<32x256xf32>
    %c0_6 = arith.constant 0 : index
    %c0_7 = arith.constant 0 : index
    %17 = vector.load %arg4[%c0_6, %c0_7] : memref<32x256xf32, #tpu.memory_space<vmem>>, vector<32x256xf32>
    %18 = arith.mulf %15, %17 : vector<32x256xf32>
    %19 = arith.mulf %14, %13 : vector<32x256xf32>
    %20 = arith.addf %18, %19 : vector<32x256xf32>
    %21 = math.tanh %20 : vector<32x256xf32>
    %22 = arith.mulf %16, %21 : vector<32x256xf32>
    %c0_8 = arith.constant 0 : index
    %c0_9 = arith.constant 0 : index
    %23 = vector.load %arg6[%c0_8, %c0_9] : memref<32x256xf32, #tpu.memory_space<vmem>>, vector<32x256xf32>
    tpu.vector_store %arg6[%c0_8, %c0_9], %20 {strides = array<i32>} : memref<32x256xf32, #tpu.memory_space<vmem>>, vector<32x256xf32>,
    %c0_10 = arith.constant 0 : index
    %c0_11 = arith.constant 0 : index
    %24 = vector.load %arg5[%c0_10, %c0_11] : memref<32x256xf32, #tpu.memory_space<vmem>>, vector<32x256xf32>
    tpu.vector_store %arg5[%c0_10, %c0_11], %22 {strides = array<i32>} : memref<32x256xf32, #tpu.memory_space<vmem>>, vector<32x256xf32>,
    return
  }
  func.func @transform_0(%arg0: i32) -> (i32, i32) {
    %c0_i32 = arith.constant 0 : i32
    %c0_i32_0 = arith.constant 0 : i32
    return %c0_i32, %arg0 : i32, i32
  }
  func.func @transform_1(%arg0: i32) -> (i32, i32) {
    %c0_i32 = arith.constant 0 : i32
    %c0_i32_0 = arith.constant 0 : i32
    %c0_i32_1 = arith.constant 0 : i32
    return %c0_i32, %c0_i32_0 : i32, i32
  }
  func.func @transform_2(%arg0: i32) -> (i32, i32) {
    %c0_i32 = arith.constant 0 : i32
    %c0_i32_0 = arith.constant 0 : i32
    %c0_i32_1 = arith.constant 0 : i32
    return %c0_i32, %c0_i32_0 : i32, i32
  }
  func.func @transform_3(%arg0: i32) -> (i32, i32) {
    %c0_i32 = arith.constant 0 : i32
    %c0_i32_0 = arith.constant 0 : i32
    return %c0_i32, %arg0 : i32, i32
  }
  func.func @transform_4(%arg0: i32) -> (i32, i32) {
    %c0_i32 = arith.constant 0 : i32
    %c0_i32_0 = arith.constant 0 : i32
    return %c0_i32, %arg0 : i32, i32
  }
  func.func @transform_5(%arg0: i32) -> (i32, i32) {
    %c0_i32 = arith.constant 0 : i32
    %c0_i32_0 = arith.constant 0 : i32
    return %c0_i32, %arg0 : i32, i32
  }
}

</mosaic_0001>

<llo_original>
// kernel: convlstm_cell.1
$region0: #{convlstm_cell.1}
  #allocation0 [shape = 'u32[]', space=smem, size = 0x4, offset = 0x4, fixed_abs, tag = 'smem constant byte address 0x4 - core index']
  #allocation1 [shape = 'u32[144,128]{1,0:T(1,128)}', space=vmem, size = 0x12000, scoped, tag = 'internal scratch']
  %s0 = inlined_call_operand.vmem [shape: f32[324,512], index: 0, kind: input, shape index: {}]
  %s1 = inlined_call_operand.vmem [shape: f32[128,324], index: 1, kind: input, shape index: {}]
  %s2 = inlined_call_operand.vmem [shape: f32[128,1], index: 2, kind: input, shape index: {}]
  %s3 = inlined_call_operand.vmem [shape: f32[32,512], index: 3, kind: input, shape index: {}, may-alias: {3,5}]
  %s4 = inlined_call_operand.vmem [shape: f32[32,512], index: 4, kind: output, shape index: {0}]
  %s5 = inlined_call_operand.vmem [shape: f32[32,512], index: 5, kind: output, shape index: {1}, may-alias: {3,5}]
  %6 = xla_tuple %s4, %s5
  %s7 = sld [smem:[#allocation0]]
  $region141: #{convlstm_cell.1} parent=0
    _
  %s9 = ssub.s32 1, %s7
  %s10 = scalar_select 0, %s9, %s7
  $region1: #{convlstm_cell.1} parent=0
    #allocation2 [shape = 'u8[671744]{0}', space=vmem, size = 0xa4000, scoped, tag = 'input window, operand 0']
    #allocation3 [shape = 'u8[65536]{0}', space=vmem, size = 0x10000, scoped, tag = 'input window, operand 3']
    #allocation4 [shape = 'u8[65536]{0}', space=vmem, size = 0x10000, scoped, tag = 'output window, operand 0']
    #allocation5 [shape = 'u8[65536]{0}', space=vmem, size = 0x10000, scoped, tag = 'output window, operand 1']
    loop: start=0, step=1, limit=4
    $region2: #{convlstm_cell.1} parent=1 // loop_pre_header
      _
    $region3: #{convlstm_cell.1} parent=1 // loop_header
      %s12 = sphi 0, %s16
      %p13 = scmp.ge.s32.totalorder %s12, 4
      %s22 = sphi 0, %s24
      %s25 = sphi 0, %s22
      %s26 = sphi 0, %s25
      %s42 = sphi 0, %s26
      %s46 = sphi 0, %s46
      %s48 = sphi 0, %s46
      %s49 = sphi 0, %s48
      %s63 = sphi 0, %s49
      %s67 = sphi 0, %s67
      %s69 = sphi 0, %s67
      %s70 = sphi 0, %s69
      %s84 = sphi 0, %s70
      %s90 = sphi 0, %s92
      %s93 = sphi 0, %s90
      %s94 = sphi 0, %s93
      %s110 = sphi 0, %s94
      %s116 = sphi 0, %s118
      %s119 = sphi 0, %s116
      %s120 = sphi 0, %s119
      %s136 = sphi 0, %s120
      %s142 = sphi 0, %s144
      %s145 = sphi 0, %s142
      %s146 = sphi 0, %s145
      %s162 = sphi 0, %s146
    $region4: #{convlstm_cell.1} parent=1 // loop_header_branch
      %15 = sbr.rel (%p13) target = $region8
    $region5: #{convlstm_cell.1} parent=1 // loop_body
      %s17 = ssub.s32 %s12, 1
      %s18 = ssub.s32 %s12, 2
      %s19 = sadd.s32 %s12, 1
      %s20 = ssub.s32 %s12, %s19
      %p21 = scmp.eq.s32.totalorder %s20, 0
      %s23 = sadd.s32 %s22, 1
      %s24 = scalar_select %p21, %s22, %s23
      %p27 = pneg %p21
      %p28 = scmp.eq.s32.totalorder %s12, 1
      %p29 = por %p27, %p28
      %p30 = scmp.ne.s32.totalorder %s22, %s25
      %p31 = scmp.eq.s32.totalorder %s12, 0
      %p32 = por %p30, %p31
      %p33 = scmp.ne.s32.totalorder %s22, %s25
      %p34 = scmp.eq.s32.totalorder %s17, 1
      %p35 = por %p33, %p34
      %p36 = scmp.ne.s32.totalorder %s25, %s26
      %p37 = scmp.eq.s32.totalorder %s17, 0
      %p38 = por %p36, %p37
      %p39 = scmp.ne.s32.totalorder %s25, %s26
      %p40 = scmp.eq.s32.totalorder %s18, 1
      %p41 = por %p39, %p40
      %p43 = scmp.ne.s32.totalorder %s26, %s42
      %p44 = scmp.eq.s32.totalorder %s18, 0
      %p45 = por %p43, %p44
      %s47 = sadd.s32 %s46, 1
      %p50 = scmp.eq.s32.totalorder %s12, 1
      %p51 = scmp.ne.s32.totalorder %s46, %s48
      %p52 = scmp.eq.s32.totalorder %s12, 0
      %p53 = por %p51, %p52
      %p54 = scmp.ne.s32.totalorder %s46, %s48
      %p55 = scmp.eq.s32.totalorder %s17, 1
      %p56 = por %p54, %p55
      %p57 = scmp.ne.s32.totalorder %s48, %s49
      %p58 = scmp.eq.s32.totalorder %s17, 0
      %p59 = por %p57, %p58
      %p60 = scmp.ne.s32.totalorder %s48, %s49
      %p61 = scmp.eq.s32.totalorder %s18, 1
      %p62 = por %p60, %p61
      %p64 = scmp.ne.s32.totalorder %s49, %s63
      %p65 = scmp.eq.s32.totalorder %s18, 0
      %p66 = por %p64, %p65
      %s68 = sadd.s32 %s67, 1
      %p71 = scmp.eq.s32.totalorder %s12, 1
      %p72 = scmp.ne.s32.totalorder %s67, %s69
      %p73 = scmp.eq.s32.totalorder %s12, 0
      %p74 = por %p72, %p73
      %p75 = scmp.ne.s32.totalorder %s67, %s69
      %p76 = scmp.eq.s32.totalorder %s17, 1
      %p77 = por %p75, %p76
      %p78 = scmp.ne.s32.totalorder %s69, %s70
      %p79 = scmp.eq.s32.totalorder %s17, 0
      %p80 = por %p78, %p79
      %p81 = scmp.ne.s32.totalorder %s69, %s70
      %p82 = scmp.eq.s32.totalorder %s18, 1
      %p83 = por %p81, %p82
      %p85 = scmp.ne.s32.totalorder %s70, %s84
      %p86 = scmp.eq.s32.totalorder %s18, 0
      %p87 = por %p85, %p86
      %s88 = ssub.s32 %s12, %s19
      %p89 = scmp.eq.s32.totalorder %s88, 0
      %s91 = sadd.s32 %s90, 1
      %s92 = scalar_select %p89, %s90, %s91
      %p95 = pneg %p89
      %p96 = scmp.eq.s32.totalorder %s12, 1
      %p97 = por %p95, %p96
      %p98 = scmp.ne.s32.totalorder %s90, %s93
      %p99 = scmp.eq.s32.totalorder %s12, 0
      %p100 = por %p98, %p99
      %p101 = scmp.ne.s32.totalorder %s90, %s93
      %p102 = scmp.eq.s32.totalorder %s17, 1
      %p103 = por %p101, %p102
      %p104 = scmp.ne.s32.totalorder %s93, %s94
      %p105 = scmp.eq.s32.totalorder %s17, 0
      %p106 = por %p104, %p105
      %p107 = scmp.ne.s32.totalorder %s93, %s94
      %p108 = scmp.eq.s32.totalorder %s18, 1
      %p109 = por %p107, %p108
      %p111 = scmp.ne.s32.totalorder %s94, %s110
      %p112 = scmp.eq.s32.totalorder %s18, 0
      %p113 = por %p111, %p112
      %s114 = ssub.s32 %s12, %s19
      %p115 = scmp.eq.s32.totalorder %s114, 0
      %s117 = sadd.s32 %s116, 1
      %s118 = scalar_select %p115, %s116, %s117
      %p121 = pneg %p115
      %p122 = scmp.eq.s32.totalorder %s12, 1
      %p123 = por %p121, %p122
      %p124 = scmp.ne.s32.totalorder %s116, %s119
      %p125 = scmp.eq.s32.totalorder %s12, 0
      %p126 = por %p124, %p125
      %p127 = scmp.ne.s32.totalorder %s116, %s119
      %p128 = scmp.eq.s32.totalorder %s17, 1
      %p129 = por %p127, %p128
      %p130 = scmp.ne.s32.totalorder %s119, %s120
      %p131 = scmp.eq.s32.totalorder %s17, 0
      %p132 = por %p130, %p131
      %p133 = scmp.ne.s32.totalorder %s119, %s120
      %p134 = scmp.eq.s32.totalorder %s18, 1
      %p135 = por %p133, %p134
      %p137 = scmp.ne.s32.totalorder %s120, %s136
      %p138 = scmp.eq.s32.totalorder %s18, 0
      %p139 = por %p137, %p138
      %s140 = ssub.s32 %s12, %s19
      %p141 = scmp.eq.s32.totalorder %s140, 0
      %s143 = sadd.s32 %s142, 1
      %s144 = scalar_select %p141, %s142, %s143
      %p147 = pneg %p141
      %p148 = scmp.eq.s32.totalorder %s12, 1
      %p149 = por %p147, %p148
      %p150 = scmp.ne.s32.totalorder %s142, %s145
      %p151 = scmp.eq.s32.totalorder %s12, 0
      %p152 = por %p150, %p151
      %p153 = scmp.ne.s32.totalorder %s142, %s145
      %p154 = scmp.eq.s32.totalorder %s17, 1
      %p155 = por %p153, %p154
      %p156 = scmp.ne.s32.totalorder %s145, %s146
      %p157 = scmp.eq.s32.totalorder %s17, 0
      %p158 = por %p156, %p157
      %p159 = scmp.ne.s32.totalorder %s145, %s146
      %p160 = scmp.eq.s32.totalorder %s18, 1
      %p161 = por %p159, %p160
      %p163 = scmp.ne.s32.totalorder %s146, %s162
      %p164 = scmp.eq.s32.totalorder %s18, 0
      %p165 = por %p163, %p164
      %p166 = scmp.le.s32.totalorder 1, %s12
      %p167 = scmp.lt.s32.totalorder %s12, 3
      %p168 = pnand %p166, %p167
      %p169 = pneg %p168
      // Predicated region
      $region9: #{convlstm_cell.1} parent=5 // pred_check
        _
      $region10: #{convlstm_cell.1} parent=5 // pred_check_branch
        %171 = sbr.rel (%p168) target = $region12
      $region11: #{convlstm_cell.1} parent=5 // pred_region
        %s172 = ssub.s32 %s12, 1
        // Predicated region
        $region13: #{convlstm_cell.1} parent=11 // pred_check
          %p173 = pneg %p59
        $region14: #{convlstm_cell.1} parent=11 // pred_check_branch
          %175 = sbr.rel (%p173) target = $region16
        $region15: #{convlstm_cell.1} parent=11 // pred_region
          _
        $region16: #{convlstm_cell.1} parent=11 // pred_fallthru
          _
        // Predicated region
        $region17: #{convlstm_cell.1} parent=11 // pred_check
          %p176 = pneg %p80
        $region18: #{convlstm_cell.1} parent=11 // pred_check_branch
          %178 = sbr.rel (%p176) target = $region20
        $region19: #{convlstm_cell.1} parent=11 // pred_region
          _
        $region20: #{convlstm_cell.1} parent=11 // pred_fallthru
          _
      $region12: #{convlstm_cell.1} parent=5 // pred_fallthru
        _
      %p179 = scmp.lt.s32.totalorder %s12, 2
      // Predicated region
      $region21: #{convlstm_cell.1} parent=5 // pred_check
        %p180 = pneg %p179
      $region22: #{convlstm_cell.1} parent=5 // pred_check_branch
        %182 = sbr.rel (%p180) target = $region24
      $region23: #{convlstm_cell.1} parent=5 // pred_region
        // Predicated region
        $region25: #{convlstm_cell.1} parent=23 // pred_check
          %p183 = pneg %p32
        $region26: #{convlstm_cell.1} parent=23 // pred_check_branch
          %185 = sbr.rel (%p183) target = $region28
        $region27: #{convlstm_cell.1} parent=23 // pred_region
          %s186 = sand.u32 %s22, 1
          %s187 = sand.u32 %s22, 1
          %s188 = smul.addr %s187, 656
          %s189 = scalar_lea.vmem [#allocation2], %s188
          %s190 = smul.u32 2, %s12
          %s191 = smul.addr %s190, 8
          %s192 = scalar_lea.vmem %s0, %s191
          // Predicated region
          $region29: #{convlstm_cell.1} parent=27 // pred_check
            _
          $region30: #{convlstm_cell.1} parent=27 // pred_check_branch
            %194 = sbr.rel (0) target = $region32
          $region31: #{convlstm_cell.1} parent=27 // pred_region
            // Predicated region
            $region33: #{convlstm_cell.1} parent=31 // pred_check
              _
            $region34: #{convlstm_cell.1} parent=31 // pred_check_branch
              %196 = sbr.rel (0) target = $region36
            $region35: #{convlstm_cell.1} parent=31 // pred_region
              loop: start=0, step=1, limit=1
              $region37: #{convlstm_cell.1} parent=35 // loop_pre_header
                _
              $region38: #{convlstm_cell.1} parent=35 // loop_header
                %s198 = sphi 0, %s202
                %p199 = scmp.ge.s32.totalorder %s198, 1
                %s203 = sphi %s192, %s192
                %s204 = sphi %s189, %s189
              $region39: #{convlstm_cell.1} parent=35 // loop_header_branch
                %201 = sbr.rel (%p199) target = $region43
              $region40: #{convlstm_cell.1} parent=35 // loop_body
                %v205 = vld [vmem:[%s203] sm:$0xff]
                %206 = vst [vmem:[%s204] sm:$0xff] %v205
                %v207 = vld [vmem:[%s203 + $0x8] sm:$0xff]
                %208 = vst [vmem:[%s204 + $0x8] sm:$0xff] %v207
                %v209 = vld [vmem:[%s203 + $0x20] sm:$0xff]
                %210 = vst [vmem:[%s204 + $0x10] sm:$0xff] %v209
                %v211 = vld [vmem:[%s203 + $0x28] sm:$0xff]
                %212 = vst [vmem:[%s204 + $0x18] sm:$0xff] %v211
                %v213 = vld [vmem:[%s203 + $0x40] sm:$0xff]
                %214 = vst [vmem:[%s204 + $0x20] sm:$0xff] %v213
                %v215 = vld [vmem:[%s203 + $0x48] sm:$0xff]
                %216 = vst [vmem:[%s204 + $0x28] sm:$0xff] %v215
                %v217 = vld [vmem:[%s203 + $0x60] sm:$0xff]
                %218 = vst [vmem:[%s204 + $0x30] sm:$0xff] %v217
                %v219 = vld [vmem:[%s203 + $0x68] sm:$0xff]
                %220 = vst [vmem:[%s204 + $0x38] sm:$0xff] %v219
                %v221 = vld [vmem:[%s203 + $0x80] sm:$0xff]
                %222 = vst [vmem:[%s204 + $0x40] sm:$0xff] %v221
                %v223 = vld [vmem:[%s203 + $0x88] sm:$0xff]
                %224 = vst [vmem:[%s204 + $0x48] sm:$0xff] %v223
                %v225 = vld [vmem:[%s203 + $0xa0] sm:$0xff]
                %226 = vst [vmem:[%s204 + $0x50] sm:$0xff] %v225
                %v227 = vld [vmem:[%s203 + $0xa8] sm:$0xff]
                %228 = vst [vmem:[%s204 + $0x58] sm:$0xff] %v227
                %v229 = vld [vmem:[%s203 + $0xc0] sm:$0xff]
                %230 = vst [vmem:[%s204 + $0x60] sm:$0xff] %v229
                %v231 = vld [vmem:[%s203 + $0xc8] sm:$0xff]
                %232 = vst [vmem:[%s204 + $0x68] sm:$0xff] %v231
                %v233 = vld [vmem:[%s203 + $0xe0] sm:$0xff]
                %234 = vst [vmem:[%s204 + $0x70] sm:$0xff] %v233
                %v235 = vld [vmem:[%s203 + $0xe8] sm:$0xff]
                %236 = vst [vmem:[%s204 + $0x78] sm:$0xff] %v235
                %v237 = vld [vmem:[%s203 + $0x100] sm:$0xff]
                %238 = vst [vmem:[%s204 + $0x80] sm:$0xff] %v237
                %v239 = vld [vmem:[%s203 + $0x108] sm:$0xff]
                %240 = vst [vmem:[%s204 + $0x88] sm:$0xff] %v239
                %v241 = vld [vmem:[%s203 + $0x120] sm:$0xff]
                %242 = vst [vmem:[%s204 + $0x90] sm:$0xff] %v241
                %v243 = vld [vmem:[%s203 + $0x128] sm:$0xff]
                %244 = vst [vmem:[%s204 + $0x98] sm:$0xff] %v243
                %v245 = vld [vmem:[%s203 + $0x140] sm:$0xff]
                %246 = vst [vmem:[%s204 + $0xa0] sm:$0xff] %v245
                %v247 = vld [vmem:[%s203 + $0x148] sm:$0xff]
                %248 = vst [vmem:[%s204 + $0xa8] sm:$0xff] %v247
                %v249 = vld [vmem:[%s203 + $0x160] sm:$0xff]
                %250 = vst [vmem:[%s204 + $0xb0] sm:$0xff] %v249
                %v251 = vld [vmem:[%s203 + $0x168] sm:$0xff]
                %252 = vst [vmem:[%s204 + $0xb8] sm:$0xff] %v251
                %v253 = vld [vmem:[%s203 + $0x180] sm:$0xff]
                %254 = vst [vmem:[%s204 + $0xc0] sm:$0xff] %v253
                %v255 = vld [vmem:[%s203 + $0x188] sm:$0xff]
                %256 = vst [vmem:[%s204 + $0xc8] sm:$0xff] %v255
                %v257 = vld [vmem:[%s203 + $0x1a0] sm:$0xff]
                %258 = vst [vmem:[%s204 + $0xd0] sm:$0xff] %v257
                %v259 = vld [vmem:[%s203 + $0x1a8] sm:$0xff]
                %260 = vst [vmem:[%s204 + $0xd8] sm:$0xff] %v259
                %v261 = vld [vmem:[%s203 + $0x1c0] sm:$0xff]
                %262 = vst [vmem:[%s204 + $0xe0] sm:$0xff] %v261
                %v263 = vld [vmem:[%s203 + $0x1c8] sm:$0xff]
                %264 = vst [vmem:[%s204 + $0xe8] sm:$0xff] %v263
                %v265 = vld [vmem:[%s203 + $0x1e0] sm:$0xff]
                %266 = vst [vmem:[%s204 + $0xf0] sm:$0xff] %v265
                %v267 = vld [vmem:[%s203 + $0x1e8] sm:$0xff]
                %268 = vst [vmem:[%s204 + $0xf8] sm:$0xff] %v267
                %v269 = vld [vmem:[%s203 + $0x200] sm:$0xff]
                %270 = vst [vmem:[%s204 + $0x100] sm:$0xff] %v269
                %v271 = vld [vmem:[%s203 + $0x208] sm:$0xff]
                %272 = vst [vmem:[%s204 + $0x108] sm:$0xff] %v271
                %v273 = vld [vmem:[%s203 + $0x220] sm:$0xff]
                %274 = vst [vmem:[%s204 + $0x110] sm:$0xff] %v273
                %v275 = vld [vmem:[%s203 + $0x228] sm:$0xff]
                %276 = vst [vmem:[%s204 + $0x118] sm:$0xff] %v275
                %v277 = vld [vmem:[%s203 + $0x240] sm:$0xff]
                %278 = vst [vmem:[%s204 + $0x120] sm:$0xff] %v277
                %v279 = vld [vmem:[%s203 + $0x248] sm:$0xff]
                %280 = vst [vmem:[%s204 + $0x128] sm:$0xff] %v279
                %v281 = vld [vmem:[%s203 + $0x260] sm:$0xff]
                %282 = vst [vmem:[%s204 + $0x130] sm:$0xff] %v281
                %v283 = vld [vmem:[%s203 + $0x268] sm:$0xff]
                %284 = vst [vmem:[%s204 + $0x138] sm:$0xff] %v283
                %v285 = vld [vmem:[%s203 + $0x280] sm:$0xff]
                %286 = vst [vmem:[%s204 + $0x140] sm:$0xff] %v285
                %v287 = vld [vmem:[%s203 + $0x288] sm:$0xff]
                %288 = vst [vmem:[%s204 + $0x148] sm:$0xff] %v287
                %v289 = vld [vmem:[%s203 + $0x2a0] sm:$0xff]
                %290 = vst [vmem:[%s204 + $0x150] sm:$0xff] %v289
                %v291 = vld [vmem:[%s203 + $0x2a8] sm:$0xff]
                %292 = vst [vmem:[%s204 + $0x158] sm:$0xff] %v291
                %v293 = vld [vmem:[%s203 + $0x2c0] sm:$0xff]
                %294 = vst [vmem:[%s204 + $0x160] sm:$0xff] %v293
                %v295 = vld [vmem:[%s203 + $0x2c8] sm:$0xff]
                %296 = vst [vmem:[%s204 + $0x168] sm:$0xff] %v295
                %v297 = vld [vmem:[%s203 + $0x2e0] sm:$0xff]
                %298 = vst [vmem:[%s204 + $0x170] sm:$0xff] %v297
                %v299 = vld [vmem:[%s203 + $0x2e8] sm:$0xff]
                %300 = vst [vmem:[%s204 + $0x178] sm:$0xff] %v299
                %v301 = vld [vmem:[%s203 + $0x300] sm:$0xff]
                %302 = vst [vmem:[%s204 + $0x180] sm:$0xff] %v301
                %v303 = vld [vmem:[%s203 + $0x308] sm:$0xff]
                %304 = vst [vmem:[%s204 + $0x188] sm:$0xff] %v303
                %v305 = vld [vmem:[%s203 + $0x320] sm:$0xff]
                %306 = vst [vmem:[%s204 + $0x190] sm:$0xff] %v305
                %v307 = vld [vmem:[%s203 + $0x328] sm:$0xff]
                %308 = vst [vmem:[%s204 + $0x198] sm:$0xff] %v307
                %v309 = vld [vmem:[%s203 + $0x340] sm:$0xff]
                %310 = vst [vmem:[%s204 + $0x1a0] sm:$0xff] %v309
                %v311 = vld [vmem:[%s203 + $0x348] sm:$0xff]
                %312 = vst [vmem:[%s204 + $0x1a8] sm:$0xff] %v311
                %v313 = vld [vmem:[%s203 + $0x360] sm:$0xff]
                %314 = vst [vmem:[%s204 + $0x1b0] sm:$0xff] %v313
                %v315 = vld [vmem:[%s203 + $0x368] sm:$0xff]
                %316 = vst [vmem:[%s204 + $0x1b8] sm:$0xff] %v315
                %v317 = vld [vmem:[%s203 + $0x380] sm:$0xff]
                %318 = vst [vmem:[%s204 + $0x1c0] sm:$0xff] %v317
                %v319 = vld [vmem:[%s203 + $0x388] sm:$0xff]
                %320 = vst [vmem:[%s204 + $0x1c8] sm:$0xff] %v319
                %v321 = vld [vmem:[%s203 + $0x3a0] sm:$0xff]
                %322 = vst [vmem:[%s204 + $0x1d0] sm:$0xff] %v321
                %v323 = vld [vmem:[%s203 + $0x3a8] sm:$0xff]
                %324 = vst [vmem:[%s204 + $0x1d8] sm:$0xff] %v323
                %v325 = vld [vmem:[%s203 + $0x3c0] sm:$0xff]
                %326 = vst [vmem:[%s204 + $0x1e0] sm:$0xff] %v325
                %v327 = vld [vmem:[%s203 + $0x3c8] sm:$0xff]
                %328 = vst [vmem:[%s204 + $0x1e8] sm:$0xff] %v327
                %v329 = vld [vmem:[%s203 + $0x3e0] sm:$0xff]
                %330 = vst [vmem:[%s204 + $0x1f0] sm:$0xff] %v329
                %v331 = vld [vmem:[%s203 + $0x3e8] sm:$0xff]
                %332 = vst [vmem:[%s204 + $0x1f8] sm:$0xff] %v331
                %v333 = vld [vmem:[%s203 + $0x400] sm:$0xff]
                %334 = vst [vmem:[%s204 + $0x200] sm:$0xff] %v333
                %v335 = vld [vmem:[%s203 + $0x408] sm:$0xff]
                %336 = vst [vmem:[%s204 + $0x208] sm:$0xff] %v335
                %v337 = vld [vmem:[%s203 + $0x420] sm:$0xff]
                %338 = vst [vmem:[%s204 + $0x210] sm:$0xff] %v337
                %v339 = vld [vmem:[%s203 + $0x428] sm:$0xff]
                %340 = vst [vmem:[%s204 + $0x218] sm:$0xff] %v339
                %v341 = vld [vmem:[%s203 + $0x440] sm:$0xff]
                %342 = vst [vmem:[%s204 + $0x220] sm:$0xff] %v341
                %v343 = vld [vmem:[%s203 + $0x448] sm:$0xff]
                %344 = vst [vmem:[%s204 + $0x228] sm:$0xff] %v343
                %v345 = vld [vmem:[%s203 + $0x460] sm:$0xff]
                %346 = vst [vmem:[%s204 + $0x230] sm:$0xff] %v345
                %v347 = vld [vmem:[%s203 + $0x468] sm:$0xff]
                %348 = vst [vmem:[%s204 + $0x238] sm:$0xff] %v347
                %v349 = vld [vmem:[%s203 + $0x480] sm:$0xff]
                %350 = vst [vmem:[%s204 + $0x240] sm:$0xff] %v349
                %v351 = vld [vmem:[%s203 + $0x488] sm:$0xff]
                %352 = vst [vmem:[%s204 + $0x248] sm:$0xff] %v351
                %v353 = vld [vmem:[%s203 + $0x4a0] sm:$0xff]
                %354 = vst [vmem:[%s204 + $0x250] sm:$0xff] %v353
                %v355 = vld [vmem:[%s203 + $0x4a8] sm:$0xff]
                %356 = vst [vmem:[%s204 + $0x258] sm:$0xff] %v355
                %v357 = vld [vmem:[%s203 + $0x4c0] sm:$0xff]
                %358 = vst [vmem:[%s204 + $0x260] sm:$0xff] %v357
                %v359 = vld [vmem:[%s203 + $0x4c8] sm:$0xff]
                %360 = vst [vmem:[%s204 + $0x268] sm:$0xff] %v359
                %v361 = vld [vmem:[%s203 + $0x4e0] sm:$0xff]
                %362 = vst [vmem:[%s204 + $0x270] sm:$0xff] %v361
                %v363 = vld [vmem:[%s203 + $0x4e8] sm:$0xff]
                %364 = vst [vmem:[%s204 + $0x278] sm:$0xff] %v363
                %v365 = vld [vmem:[%s203 + $0x500] sm:$0xff]
                %366 = vst [vmem:[%s204 + $0x280] sm:$0xff] %v365
                %v367 = vld [vmem:[%s203 + $0x508] sm:$0xff]
                %368 = vst [vmem:[%s204 + $0x288] sm:$0xff] %v367
              $region41: #{convlstm_cell.1} parent=35 // loop_footer
                %s202 = sadd.s32 1, %s198
              $region42: #{convlstm_cell.1} parent=35 // loop_footer_branch
                %197 = sbr.rel target = $region38
              $region43: #{convlstm_cell.1} parent=35 // loop_exit
                _
            $region36: #{convlstm_cell.1} parent=31 // pred_fallthru
              _
            // Predicated region
            $region44: #{convlstm_cell.1} parent=31 // pred_check
              _
            $region45: #{convlstm_cell.1} parent=31 // pred_check_branch
              %370 = sbr.rel target = $region47
            $region46: #{convlstm_cell.1} parent=31 // pred_region
              _
            $region47: #{convlstm_cell.1} parent=31 // pred_fallthru
              _
          $region32: #{convlstm_cell.1} parent=27 // pred_fallthru
            _
          %371 = vnop
        $region28: #{convlstm_cell.1} parent=23 // pred_fallthru
          _
        // Predicated region
        $region48: #{convlstm_cell.1} parent=23 // pred_check
          %p372 = pneg %p100
        $region49: #{convlstm_cell.1} parent=23 // pred_check_branch
          %374 = sbr.rel (%p372) target = $region51
        $region50: #{convlstm_cell.1} parent=23 // pred_region
          %s375 = sand.u32 %s90, 1
          %s376 = sand.u32 %s90, 1
          %s377 = smul.addr %s376, 64
          %s378 = scalar_lea.vmem [#allocation3], %s377
          %s379 = smul.u32 2, %s12
          %s380 = smul.addr %s379, 8
          %s381 = scalar_lea.vmem %s3, %s380
          // Predicated region
          $region52: #{convlstm_cell.1} parent=50 // pred_check
            _
          $region53: #{convlstm_cell.1} parent=50 // pred_check_branch
            %383 = sbr.rel (0) target = $region55
          $region54: #{convlstm_cell.1} parent=50 // pred_region
            // Predicated region
            $region56: #{convlstm_cell.1} parent=54 // pred_check
              _
            $region57: #{convlstm_cell.1} parent=54 // pred_check_branch
              %385 = sbr.rel (0) target = $region59
            $region58: #{convlstm_cell.1} parent=54 // pred_region
              loop: start=0, step=1, limit=1
              $region60: #{convlstm_cell.1} parent=58 // loop_pre_header
                _
              $region61: #{convlstm_cell.1} parent=58 // loop_header
                %s387 = sphi 0, %s391
                %p388 = scmp.ge.s32.totalorder %s387, 1
                %s392 = sphi %s381, %s381
                %s393 = sphi %s378, %s378
              $region62: #{convlstm_cell.1} parent=58 // loop_header_branch
                %390 = sbr.rel (%p388) target = $region66
              $region63: #{convlstm_cell.1} parent=58 // loop_body
                %v394 = vld [vmem:[%s392] sm:$0xff]
                %395 = vst [vmem:[%s393] sm:$0xff] %v394
                %v396 = vld [vmem:[%s392 + $0x8] sm:$0xff]
                %397 = vst [vmem:[%s393 + $0x8] sm:$0xff] %v396
                %v398 = vld [vmem:[%s392 + $0x20] sm:$0xff]
                %399 = vst [vmem:[%s393 + $0x10] sm:$0xff] %v398
                %v400 = vld [vmem:[%s392 + $0x28] sm:$0xff]
                %401 = vst [vmem:[%s393 + $0x18] sm:$0xff] %v400
                %v402 = vld [vmem:[%s392 + $0x40] sm:$0xff]
                %403 = vst [vmem:[%s393 + $0x20] sm:$0xff] %v402
                %v404 = vld [vmem:[%s392 + $0x48] sm:$0xff]
                %405 = vst [vmem:[%s393 + $0x28] sm:$0xff] %v404
                %v406 = vld [vmem:[%s392 + $0x60] sm:$0xff]
                %407 = vst [vmem:[%s393 + $0x30] sm:$0xff] %v406
                %v408 = vld [vmem:[%s392 + $0x68] sm:$0xff]
                %409 = vst [vmem:[%s393 + $0x38] sm:$0xff] %v408
              $region64: #{convlstm_cell.1} parent=58 // loop_footer
                %s391 = sadd.s32 1, %s387
              $region65: #{convlstm_cell.1} parent=58 // loop_footer_branch
                %386 = sbr.rel target = $region61
              $region66: #{convlstm_cell.1} parent=58 // loop_exit
                _
            $region59: #{convlstm_cell.1} parent=54 // pred_fallthru
              _
            // Predicated region
            $region67: #{convlstm_cell.1} parent=54 // pred_check
              _
            $region68: #{convlstm_cell.1} parent=54 // pred_check_branch
              %411 = sbr.rel target = $region70
            $region69: #{convlstm_cell.1} parent=54 // pred_region
              _
            $region70: #{convlstm_cell.1} parent=54 // pred_fallthru
              _
          $region55: #{convlstm_cell.1} parent=50 // pred_fallthru
            _
          %412 = vnop
        $region51: #{convlstm_cell.1} parent=23 // pred_fallthru
          _
      $region24: #{convlstm_cell.1} parent=5 // pred_fallthru
        _
      %p413 = scmp.le.s32.totalorder 1, %s12
      %p414 = scmp.lt.s32.totalorder %s12, 3
      %p415 = pnand %p413, %p414
      %p416 = pneg %p415
      // Predicated region
      $region71: #{convlstm_cell.1} parent=5 // pred_check
        _
      $region72: #{convlstm_cell.1} parent=5 // pred_check_branch
        %418 = sbr.rel (%p415) target = $region74
      $region73: #{convlstm_cell.1} parent=5 // pred_region
        %s419 = ssub.s32 %s12, 1
        %s420 = sand.u32 %s25, 1
        %s421 = sand.u32 %s25, 1
        %s422 = smul.addr %s421, 656
        %s423 = scalar_lea.vmem [#allocation2], %s422
        // Predicated region
        $region75: #{convlstm_cell.1} parent=73 // pred_check
          %p424 = pneg %p38
        $region76: #{convlstm_cell.1} parent=73 // pred_check_branch
          %426 = sbr.rel (%p424) target = $region78
        $region77: #{convlstm_cell.1} parent=73 // pred_region
          _
        $region78: #{convlstm_cell.1} parent=73 // pred_fallthru
          _
        %s427 = sand.u32 %s93, 1
        %s428 = sand.u32 %s93, 1
        %s429 = smul.addr %s428, 64
        %s430 = scalar_lea.vmem [#allocation3], %s429
        // Predicated region
        $region79: #{convlstm_cell.1} parent=73 // pred_check
          %p431 = pneg %p106
        $region80: #{convlstm_cell.1} parent=73 // pred_check_branch
          %433 = sbr.rel (%p431) target = $region82
        $region81: #{convlstm_cell.1} parent=73 // pred_region
          _
        $region82: #{convlstm_cell.1} parent=73 // pred_fallthru
          _
        %s434 = sand.u32 %s25, 1
        %s435 = sand.u32 %s25, 1
        %s436 = smul.addr %s435, 656
        %s437 = scalar_lea.vmem [#allocation2], %s436
        %p438 = pneg %p38
        %p439 = pneg %p35
        %p440 = pneg %p59
        %p441 = pneg %p56
        %p442 = pneg %p80
        %p443 = pneg %p77
        %s444 = sand.u32 %s93, 1
        %s445 = sand.u32 %s93, 1
        %s446 = smul.addr %s445, 64
        %s447 = scalar_lea.vmem [#allocation3], %s446
        %p448 = pneg %p106
        %p449 = pneg %p103
        %p450 = pneg %p132
        %p451 = pneg %p129
        %s452 = sand.u32 %s119, 1
        %s453 = sand.u32 %s119, 1
        %s454 = smul.addr %s453, 64
        %s455 = scalar_lea.vmem [#allocation4], %s454
        %p456 = pneg %p158
        %p457 = pneg %p155
        %s458 = sand.u32 %s145, 1
        %s459 = sand.u32 %s145, 1
        %s460 = smul.addr %s459, 64
        %s461 = scalar_lea.vmem [#allocation5], %s460
        %s462 = smul.u32 2, %s17
        %s463 = smul.u32 2, %s17
        %s464 = smul.u32 2, %s17
        %s465 = smul.u32 2, %s17
        %v466 = vld [vmem:[%s1] sm:$0xff]
        %v467 = vld [vmem:[%s1 + $0x8] sm:$0xff]
        %v468 = vld [vmem:[%s1 + $0x10] sm:$0xff]
        %v469 = vld [vmem:[%s1 + $0x18] sm:$0xff]
        %v470 = vld [vmem:[%s1 + $0x20] sm:$0xff]
        %v471 = vld [vmem:[%s1 + $0x28] sm:$0xff]
        %v472 = vld [vmem:[%s1 + $0x30] sm:$0xff]
        %v473 = vld [vmem:[%s1 + $0x38] sm:$0xff]
        %v474 = vld [vmem:[%s1 + $0x40] sm:$0xff]
        %v475 = vld [vmem:[%s1 + $0x48] sm:$0xff]
        %v476 = vld [vmem:[%s1 + $0x50] sm:$0xff]
        %v477 = vld [vmem:[%s1 + $0x58] sm:$0xff]
        %v478 = vld [vmem:[%s1 + $0x60] sm:$0xff]
        %v479 = vld [vmem:[%s1 + $0x68] sm:$0xff]
        %v480 = vld [vmem:[%s1 + $0x70] sm:$0xff]
        %v481 = vld [vmem:[%s1 + $0x78] sm:$0xff]
        %v482 = vld [vmem:[%s1 + $0x80] sm:$0xff]
        %v483 = vld [vmem:[%s1 + $0x88] sm:$0xff]
        %v484 = vld [vmem:[%s1 + $0x90] sm:$0xff]
        %v485 = vld [vmem:[%s1 + $0x98] sm:$0xff]
        %v486 = vld [vmem:[%s1 + $0xa0] sm:$0xff]
        %v487 = vld [vmem:[%s1 + $0xa8] sm:$0xff]
        %v488 = vld [vmem:[%s1 + $0xb0] sm:$0xff]
        %v489 = vld [vmem:[%s1 + $0xb8] sm:$0xff]
        %v490 = vld [vmem:[%s1 + $0xc0] sm:$0xff]
        %v491 = vld [vmem:[%s1 + $0xc8] sm:$0xff]
        %v492 = vld [vmem:[%s1 + $0xd0] sm:$0xff]
        %v493 = vld [vmem:[%s1 + $0xd8] sm:$0xff]
        %v494 = vld [vmem:[%s1 + $0xe0] sm:$0xff]
        %v495 = vld [vmem:[%s1 + $0xe8] sm:$0xff]
        %v496 = vld [vmem:[%s1 + $0xf0] sm:$0xff]
        %v497 = vld [vmem:[%s1 + $0xf8] sm:$0xff]
        %v498 = vld [vmem:[%s1 + $0x100] sm:$0xff]
        %v499 = vld [vmem:[%s1 + $0x108] sm:$0xff]
        %v500 = vld [vmem:[%s1 + $0x110] sm:$0xff]
        %v501 = vld [vmem:[%s1 + $0x118] sm:$0xff]
        %v502 = vld [vmem:[%s1 + $0x120] sm:$0xff]
        %v503 = vld [vmem:[%s1 + $0x128] sm:$0xff]
        %v504 = vld [vmem:[%s1 + $0x130] sm:$0xff]
        %v505 = vld [vmem:[%s1 + $0x138] sm:$0xff]
        %v506 = vld [vmem:[%s1 + $0x140] sm:$0xff]
        %v507 = vld [vmem:[%s1 + $0x148] sm:$0xff]
        %v508 = vld [vmem:[%s1 + $0x150] sm:$0xff]
        %v509 = vld [vmem:[%s1 + $0x158] sm:$0xff]
        %v510 = vld [vmem:[%s1 + $0x160] sm:$0xff]
        %v511 = vld [vmem:[%s1 + $0x168] sm:$0xff]
        %v512 = vld [vmem:[%s1 + $0x170] sm:$0xff]
        %v513 = vld [vmem:[%s1 + $0x178] sm:$0xff]
        %v514 = vld [vmem:[%s423] sm:$0xff]
        %v515 = vld [vmem:[%s423 + $0x8] sm:$0xff]
        %v516 = vld [vmem:[%s423 + $0x10] sm:$0xff]
        %v517 = vld [vmem:[%s423 + $0x18] sm:$0xff]
        %v518 = vld [vmem:[%s423 + $0x20] sm:$0xff]
        %v519 = vld [vmem:[%s423 + $0x28] sm:$0xff]
        %v520 = vld [vmem:[%s423 + $0x30] sm:$0xff]
        %v521 = vld [vmem:[%s423 + $0x38] sm:$0xff]
        %v522 = vld [vmem:[%s423 + $0x40] sm:$0xff]
        %v523 = vld [vmem:[%s423 + $0x48] sm:$0xff]
        %v524 = vld [vmem:[%s423 + $0x50] sm:$0xff]
        %v525 = vld [vmem:[%s423 + $0x58] sm:$0xff]
        %v526 = vld [vmem:[%s423 + $0x60] sm:$0xff]
        %v527 = vld [vmem:[%s423 + $0x68] sm:$0xff]
        %v528 = vld [vmem:[%s423 + $0x70] sm:$0xff]
        %v529 = vld [vmem:[%s423 + $0x78] sm:$0xff]
        %v530 = vld [vmem:[%s423 + $0x80] sm:$0xff]
        %v531 = vld [vmem:[%s423 + $0x88] sm:$0xff]
        %v532 = vld [vmem:[%s423 + $0x90] sm:$0xff]
        %v533 = vld [vmem:[%s423 + $0x98] sm:$0xff]
        %v534 = vld [vmem:[%s423 + $0xa0] sm:$0xff]
        %v535 = vld [vmem:[%s423 + $0xa8] sm:$0xff]
        %v536 = vld [vmem:[%s423 + $0xb0] sm:$0xff]
        %v537 = vld [vmem:[%s423 + $0xb8] sm:$0xff]
        %v538 = vld [vmem:[%s423 + $0xc0] sm:$0xff]
        %v539 = vld [vmem:[%s423 + $0xc8] sm:$0xff]
        %v540 = vld [vmem:[%s423 + $0xd0] sm:$0xff]
        %v541 = vld [vmem:[%s423 + $0xd8] sm:$0xff]
        %v542 = vld [vmem:[%s423 + $0xe0] sm:$0xff]
        %v543 = vld [vmem:[%s423 + $0xe8] sm:$0xff]
        %v544 = vld [vmem:[%s423 + $0xf0] sm:$0xff]
        %v545 = vld [vmem:[%s423 + $0xf8] sm:$0xff]
        %v546 = vld [vmem:[%s423 + $0x100] sm:$0xff]
        %v547 = vld [vmem:[%s423 + $0x108] sm:$0xff]
        %v548 = vld [vmem:[%s423 + $0x110] sm:$0xff]
        %v549 = vld [vmem:[%s423 + $0x118] sm:$0xff]
        %v550 = vld [vmem:[%s423 + $0x120] sm:$0xff]
        %v551 = vld [vmem:[%s423 + $0x128] sm:$0xff]
        %v552 = vld [vmem:[%s423 + $0x130] sm:$0xff]
        %v553 = vld [vmem:[%s423 + $0x138] sm:$0xff]
        %v554 = vld [vmem:[%s423 + $0x140] sm:$0xff]
        %v555 = vld [vmem:[%s423 + $0x148] sm:$0xff]
        %v556 = vld [vmem:[%s423 + $0x150] sm:$0xff]
        %v557 = vld [vmem:[%s423 + $0x158] sm:$0xff]
        %v558 = vld [vmem:[%s423 + $0x160] sm:$0xff]
        %v559 = vld [vmem:[%s423 + $0x168] sm:$0xff]
        %v560 = vld [vmem:[%s423 + $0x170] sm:$0xff]
        %v561 = vld [vmem:[%s423 + $0x178] sm:$0xff]
        %v562 = vld [vmem:[%s423 + $0x180] sm:$0xff]
        %v563 = vld [vmem:[%s423 + $0x188] sm:$0xff]
        %v564 = vld [vmem:[%s423 + $0x190] sm:$0xff]
        %v565 = vld [vmem:[%s423 + $0x198] sm:$0xff]
        %v566 = vld [vmem:[%s423 + $0x1a0] sm:$0xff]
        %v567 = vld [vmem:[%s423 + $0x1a8] sm:$0xff]
        %v568 = vld [vmem:[%s423 + $0x1b0] sm:$0xff]
        %v569 = vld [vmem:[%s423 + $0x1b8] sm:$0xff]
        %v570 = vld [vmem:[%s423 + $0x1c0] sm:$0xff]
        %v571 = vld [vmem:[%s423 + $0x1c8] sm:$0xff]
        %v572 = vld [vmem:[%s423 + $0x1d0] sm:$0xff]
        %v573 = vld [vmem:[%s423 + $0x1d8] sm:$0xff]
        %v574 = vld [vmem:[%s423 + $0x1e0] sm:$0xff]
        %v575 = vld [vmem:[%s423 + $0x1e8] sm:$0xff]
        %v576 = vld [vmem:[%s423 + $0x1f0] sm:$0xff]
        %v577 = vld [vmem:[%s423 + $0x1f8] sm:$0xff]
        %v578 = vld [vmem:[%s423 + $0x200] sm:$0xff]
        %v579 = vld [vmem:[%s423 + $0x208] sm:$0xff]
        %v580 = vld [vmem:[%s423 + $0x210] sm:$0xff]
        %v581 = vld [vmem:[%s423 + $0x218] sm:$0xff]
        %v582 = vld [vmem:[%s423 + $0x220] sm:$0xff]
        %v583 = vld [vmem:[%s423 + $0x228] sm:$0xff]
        %v584 = vld [vmem:[%s423 + $0x230] sm:$0xff]
        %v585 = vld [vmem:[%s423 + $0x238] sm:$0xff]
        %v586 = vld [vmem:[%s423 + $0x240] sm:$0xff]
        %v587 = vld [vmem:[%s423 + $0x248] sm:$0xff]
        %v588 = vld [vmem:[%s423 + $0x250] sm:$0xff]
        %v589 = vld [vmem:[%s423 + $0x258] sm:$0xff]
        %v590 = vld [vmem:[%s423 + $0x260] sm:$0xff]
        %v591 = vld [vmem:[%s423 + $0x268] sm:$0xff]
        %v592 = vld [vmem:[%s423 + $0x270] sm:$0xff]
        %v593 = vld [vmem:[%s423 + $0x278] sm:$0xff]
        %v594 = vld [vmem:[%s423 + $0x280] sm:$0xf]
        %v595 = vld [vmem:[%s423 + $0x288] sm:$0xf]
        %v596 = vld [vmem:[%s2] sm:$0xff]
        %v597 = vld [vmem:[%s2 + $0x8] sm:$0xff]
        %v598 = vld [vmem:[%s2 + $0x10] sm:$0xff]
        %v599 = vld [vmem:[%s2 + $0x18] sm:$0xff]
        %v600 = vld [vmem:[%s2 + $0x20] sm:$0xff]
        %v601 = vld [vmem:[%s2 + $0x28] sm:$0xff]
        %v602 = vld [vmem:[%s2 + $0x30] sm:$0xff]
        %v603 = vld [vmem:[%s2 + $0x38] sm:$0xff]
        %v604 = vld [vmem:[%s2 + $0x40] sm:$0xff]
        %v605 = vld [vmem:[%s2 + $0x48] sm:$0xff]
        %v606 = vld [vmem:[%s2 + $0x50] sm:$0xff]
        %v607 = vld [vmem:[%s2 + $0x58] sm:$0xff]
        %v608 = vld [vmem:[%s2 + $0x60] sm:$0xff]
        %v609 = vld [vmem:[%s2 + $0x68] sm:$0xff]
        %v610 = vld [vmem:[%s2 + $0x70] sm:$0xff]
        %v611 = vld [vmem:[%s2 + $0x78] sm:$0xff]
        %613 = vset.pattern.permute.xlu0 0
        %614 = vperm.xlu0 %613, %v596
        %v615 = vpop.permute.xlu0 %614
        %618 = vset.pattern.permute.xlu0 0
        %619 = vperm.xlu0 %618, %v597
        %v620 = vpop.permute.xlu0 %619
        %623 = vset.pattern.permute.xlu0 0
        %624 = vperm.xlu0 %623, %v598
        %v625 = vpop.permute.xlu0 %624
        %628 = vset.pattern.permute.xlu0 0
        %629 = vperm.xlu0 %628, %v599
        %v630 = vpop.permute.xlu0 %629
        %633 = vset.pattern.permute.xlu0 0
        %634 = vperm.xlu0 %633, %v600
        %v635 = vpop.permute.xlu0 %634
        %638 = vset.pattern.permute.xlu0 0
        %639 = vperm.xlu0 %638, %v601
        %v640 = vpop.permute.xlu0 %639
        %643 = vset.pattern.permute.xlu0 0
        %644 = vperm.xlu0 %643, %v602
        %v645 = vpop.permute.xlu0 %644
        %648 = vset.pattern.permute.xlu0 0
        %649 = vperm.xlu0 %648, %v603
        %v650 = vpop.permute.xlu0 %649
        %653 = vset.pattern.permute.xlu0 0
        %654 = vperm.xlu0 %653, %v604
        %v655 = vpop.permute.xlu0 %654
        %658 = vset.pattern.permute.xlu0 0
        %659 = vperm.xlu0 %658, %v605
        %v660 = vpop.permute.xlu0 %659
        %663 = vset.pattern.permute.xlu0 0
        %664 = vperm.xlu0 %663, %v606
        %v665 = vpop.permute.xlu0 %664
        %668 = vset.pattern.permute.xlu0 0
        %669 = vperm.xlu0 %668, %v607
        %v670 = vpop.permute.xlu0 %669
        %673 = vset.pattern.permute.xlu0 0
        %674 = vperm.xlu0 %673, %v608
        %v675 = vpop.permute.xlu0 %674
        %678 = vset.pattern.permute.xlu0 0
        %679 = vperm.xlu0 %678, %v609
        %v680 = vpop.permute.xlu0 %679
        %683 = vset.pattern.permute.xlu0 0
        %684 = vperm.xlu0 %683, %v610
        %v685 = vpop.permute.xlu0 %684
        %688 = vset.pattern.permute.xlu0 0
        %689 = vperm.xlu0 %688, %v611
        %v690 = vpop.permute.xlu0 %689
        %vm692 = vcmask 556032
        %v694 = vsel %vm692, %v468, 0
        %v697 = vsel %vm692, %v471, 0
        %v700 = vsel %vm692, %v474, 0
        %v703 = vsel %vm692, %v477, 0
        %v706 = vsel %vm692, %v480, 0
        %v709 = vsel %vm692, %v483, 0
        %v712 = vsel %vm692, %v486, 0
        %v715 = vsel %vm692, %v489, 0
        %v718 = vsel %vm692, %v492, 0
        %v721 = vsel %vm692, %v495, 0
        %v724 = vsel %vm692, %v498, 0
        %v727 = vsel %vm692, %v501, 0
        %v730 = vsel %vm692, %v504, 0
        %v733 = vsel %vm692, %v507, 0
        %v736 = vsel %vm692, %v510, 0
        %v739 = vsel %vm692, %v513, 0
        %vm741 = vcmask 1043456
        %v743 = vsel %vm741, %v594, 0
        %v746 = vsel %vm741, %v595, 0
        %748 = vmatprep.subr.mxu0 %v515
        %749 = vmatpush1.msra.mxu0 %v514
        %750 = vmatprep.subr.mxu0 %v517
        %751 = vmatpush1.msra.mxu0 %v516
        %752 = vmatprep.subr.mxu0 %v519
        %753 = vmatpush1.msra.mxu0 %v518
        %754 = vmatprep.subr.mxu0 %v521
        %755 = vmatpush1.msra.mxu0 %v520
        %756 = vmatprep.subr.mxu0 %v523
        %757 = vmatpush1.msra.mxu0 %v522
        %758 = vmatprep.subr.mxu0 %v525
        %759 = vmatpush1.msra.mxu0 %v524
        %760 = vmatprep.subr.mxu0 %v527
        %761 = vmatpush1.msra.mxu0 %v526
        %762 = vmatprep.subr.mxu0 %v529
        %763 = vmatpush1.msra.mxu0 %v528
        %764 = vmatprep.subr.mxu0 %v531
        %765 = vmatpush1.msra.mxu0 %v530
        %766 = vmatprep.subr.mxu0 %v533
        %767 = vmatpush1.msra.mxu0 %v532
        %768 = vmatprep.subr.mxu0 %v535
        %769 = vmatpush1.msra.mxu0 %v534
        %770 = vmatprep.subr.mxu0 %v537
        %771 = vmatpush1.msra.mxu0 %v536
        %772 = vmatprep.subr.mxu0 %v539
        %773 = vmatpush1.msra.mxu0 %v538
        %774 = vmatprep.subr.mxu0 %v541
        %775 = vmatpush1.msra.mxu0 %v540
        %776 = vmatprep.subr.mxu0 %v543
        %777 = vmatpush1.msra.mxu0 %v542
        %778 = vmatprep.subr.mxu0 %v545
        %779 = vmatpush1.msra.mxu0 %v544
        %780 = vmatprep.subr.mxu0 %v547
        %781 = vmatpush1.msra.mxu0 %v546
        %782 = vmatprep.subr.mxu0 %v549
        %783 = vmatpush1.msra.mxu0 %v548
        %784 = vmatprep.subr.mxu0 %v551
        %785 = vmatpush1.msra.mxu0 %v550
        %786 = vmatprep.subr.mxu0 %v553
        %787 = vmatpush1.msra.mxu0 %v552
        %788 = vmatprep.subr.mxu0 %v555
        %789 = vmatpush1.msra.mxu0 %v554
        %790 = vmatprep.subr.mxu0 %v557
        %791 = vmatpush1.msra.mxu0 %v556
        %792 = vmatprep.subr.mxu0 %v559
        %793 = vmatpush1.msra.mxu0 %v558
        %794 = vmatprep.subr.mxu0 %v561
        %795 = vmatpush1.msra.mxu0 %v560
        %796 = vmatprep.subr.mxu0 %v563
        %797 = vmatpush1.msra.mxu0 %v562
        %798 = vmatprep.subr.mxu0 %v565
        %799 = vmatpush1.msra.mxu0 %v564
        %800 = vmatprep.subr.mxu0 %v567
        %801 = vmatpush1.msra.mxu0 %v566
        %802 = vmatprep.subr.mxu0 %v569
        %803 = vmatpush1.msra.mxu0 %v568
        %804 = vmatprep.subr.mxu0 %v571
        %805 = vmatpush1.msra.mxu0 %v570
        %806 = vmatprep.subr.mxu0 %v573
        %807 = vmatpush1.msra.mxu0 %v572
        %808 = vmatprep.subr.mxu0 %v575
        %809 = vmatpush1.msra.mxu0 %v574
        %810 = vmatprep.subr.mxu0 %v577
        %811 = vmatpush1.msra.mxu0 %v576
        %812 = vmatprep.mubr.f32.mxu0 %v467
        %813 = vmatmul.mubr.f32.gmra.mrb[0].mxu0 %v466
        %v814 = vpop.f32.mrb[0].mxu0
        %v815 = vadd.f32 %v615, %v814
        %v816 = vpop.f32.mrb[0].mxu0
        %v817 = vadd.f32 %v615, %v816
        %818 = vmatprep.mubr.f32.mxu0 %v470
        %819 = vmatmul.mubr.f32.gmra.mrb[0].mxu0 %v469
        %v820 = vpop.f32.mrb[0].mxu0
        %v821 = vadd.f32 %v620, %v820
        %v822 = vpop.f32.mrb[0].mxu0
        %v823 = vadd.f32 %v620, %v822
        %824 = vmatprep.mubr.f32.mxu0 %v473
        %825 = vmatmul.mubr.f32.gmra.mrb[0].mxu0 %v472
        %v826 = vpop.f32.mrb[0].mxu0
        %v827 = vadd.f32 %v625, %v826
        %v828 = vpop.f32.mrb[0].mxu0
        %v829 = vadd.f32 %v625, %v828
        %830 = vmatprep.mubr.f32.mxu0 %v476
        %831 = vmatmul.mubr.f32.gmra.mrb[0].mxu0 %v475
        %v832 = vpop.f32.mrb[0].mxu0
        %v833 = vadd.f32 %v630, %v832
        %v834 = vpop.f32.mrb[0].mxu0
        %v835 = vadd.f32 %v630, %v834
        %836 = vmatprep.mubr.f32.mxu0 %v479
        %837 = vmatmul.mubr.f32.gmra.mrb[0].mxu0 %v478
        %v838 = vpop.f32.mrb[0].mxu0
        %v839 = vadd.f32 %v635, %v838
        %v840 = vpop.f32.mrb[0].mxu0
        %v841 = vadd.f32 %v635, %v840
        %842 = vmatprep.mubr.f32.mxu0 %v482
        %843 = vmatmul.mubr.f32.gmra.mrb[0].mxu0 %v481
        %v844 = vpop.f32.mrb[0].mxu0
        %v845 = vadd.f32 %v640, %v844
        %v846 = vpop.f32.mrb[0].mxu0
        %v847 = vadd.f32 %v640, %v846
        %848 = vmatprep.mubr.f32.mxu0 %v485
        %849 = vmatmul.mubr.f32.gmra.mrb[0].mxu0 %v484
        %v850 = vpop.f32.mrb[0].mxu0
        %v851 = vadd.f32 %v645, %v850
        %v852 = vpop.f32.mrb[0].mxu0
        %v853 = vadd.f32 %v645, %v852
        %854 = vmatprep.mubr.f32.mxu0 %v488
        %855 = vmatmul.mubr.f32.gmra.mrb[0].mxu0 %v487
        %v856 = vpop.f32.mrb[0].mxu0
        %v857 = vadd.f32 %v650, %v856
        %v858 = vpop.f32.mrb[0].mxu0
        %v859 = vadd.f32 %v650, %v858
        %860 = vmatprep.mubr.f32.mxu0 %v491
        %861 = vmatmul.mubr.f32.gmra.mrb[0].mxu0 %v490
        %v862 = vpop.f32.mrb[0].mxu0
        %v863 = vadd.f32 %v655, %v862
        %v864 = vpop.f32.mrb[0].mxu0
        %v865 = vadd.f32 %v655, %v864
        %866 = vmatprep.mubr.f32.mxu0 %v494
        %867 = vmatmul.mubr.f32.gmra.mrb[0].mxu0 %v493
        %v868 = vpop.f32.mrb[0].mxu0
        %v869 = vadd.f32 %v660, %v868
        %v870 = vpop.f32.mrb[0].mxu0
        %v871 = vadd.f32 %v660, %v870
        %872 = vmatprep.mubr.f32.mxu0 %v497
        %873 = vmatmul.mubr.f32.gmra.mrb[0].mxu0 %v496
        %v874 = vpop.f32.mrb[0].mxu0
        %v875 = vadd.f32 %v665, %v874
        %v876 = vpop.f32.mrb[0].mxu0
        %v877 = vadd.f32 %v665, %v876
        %878 = vmatprep.mubr.f32.mxu0 %v500
        %879 = vmatmul.mubr.f32.gmra.mrb[0].mxu0 %v499
        %v880 = vpop.f32.mrb[0].mxu0
        %v881 = vadd.f32 %v670, %v880
        %v882 = vpop.f32.mrb[0].mxu0
        %v883 = vadd.f32 %v670, %v882
        %884 = vmatprep.mubr.f32.mxu0 %v503
        %885 = vmatmul.mubr.f32.gmra.mrb[0].mxu0 %v502
        %v886 = vpop.f32.mrb[0].mxu0
        %v887 = vadd.f32 %v675, %v886
        %v888 = vpop.f32.mrb[0].mxu0
        %v889 = vadd.f32 %v675, %v888
        %890 = vmatprep.mubr.f32.mxu0 %v506
        %891 = vmatmul.mubr.f32.gmra.mrb[0].mxu0 %v505
        %v892 = vpop.f32.mrb[0].mxu0
        %v893 = vadd.f32 %v680, %v892
        %v894 = vpop.f32.mrb[0].mxu0
        %v895 = vadd.f32 %v680, %v894
        %896 = vmatprep.mubr.f32.mxu0 %v509
        %897 = vmatmul.mubr.f32.gmra.mrb[0].mxu0 %v508
        %v898 = vpop.f32.mrb[0].mxu0
        %v899 = vadd.f32 %v685, %v898
        %v900 = vpop.f32.mrb[0].mxu0
        %v901 = vadd.f32 %v685, %v900
        %902 = vmatprep.mubr.f32.mxu0 %v512
        %903 = vmatmul.mubr.f32.gmra.mrb[0].mxu0 %v511
        %v904 = vpop.f32.mrb[0].mxu0
        %v905 = vadd.f32 %v690, %v904
        %v906 = vpop.f32.mrb[0].mxu0
        %v907 = vadd.f32 %v690, %v906
        %908 = vdwg.mxu0
        %909 = vmatprep.subr.mxu0 %v579
        %910 = vmatpush1.msra.mxu0 %v578
        %911 = vmatprep.subr.mxu0 %v581
        %912 = vmatpush1.msra.mxu0 %v580
        %913 = vmatprep.subr.mxu0 %v583
        %914 = vmatpush1.msra.mxu0 %v582
        %915 = vmatprep.subr.mxu0 %v585
        %916 = vmatpush1.msra.mxu0 %v584
        %917 = vmatprep.subr.mxu0 %v587
        %918 = vmatpush1.msra.mxu0 %v586
        %919 = vmatprep.subr.mxu0 %v589
        %920 = vmatpush1.msra.mxu0 %v588
        %921 = vmatprep.subr.mxu0 %v591
        %922 = vmatpush1.msra.mxu0 %v590
        %923 = vmatprep.subr.mxu0 %v593
        %924 = vmatpush1.msra.mxu0 %v592
        %925 = vmatprep.subr.mxu0 %v746
        %926 = vmatpush1.msra.mxu0 %v743
        %927 = vmatprep.subr.mxu0 0.0
        %928 = vmatpush1.msra.mxu0 0.0
        %929 = vmatprep.subr.mxu0 0.0
        %930 = vmatpush1.msra.mxu0 0.0
        %931 = vmatprep.subr.mxu0 0.0
        %932 = vmatpush1.msra.mxu0 0.0
        %933 = vmatprep.subr.mxu0 0.0
        %934 = vmatpush1.msra.mxu0 0.0
        %935 = vmatprep.subr.mxu0 0.0
        %936 = vmatpush1.msra.mxu0 0.0
        %937 = vmatprep.subr.mxu0 0.0
        %938 = vmatpush1.msra.mxu0 0.0
        %939 = vmatprep.subr.mxu0 0.0
        %940 = vmatpush1.msra.mxu0 0.0
        %941 = vmatprep.subr.mxu0 0.0
        %942 = vmatpush1.msra.mxu0 0.0
        %943 = vmatprep.subr.mxu0 0.0
        %944 = vmatpush1.msra.mxu0 0.0
        %945 = vmatprep.subr.mxu0 0.0
        %946 = vmatpush1.msra.mxu0 0.0
        %947 = vmatprep.subr.mxu0 0.0
        %948 = vmatpush1.msra.mxu0 0.0
        %949 = vmatprep.subr.mxu0 0.0
        %950 = vmatpush1.msra.mxu0 0.0
        %951 = vmatprep.subr.mxu0 0.0
        %952 = vmatpush1.msra.mxu0 0.0
        %953 = vmatprep.subr.mxu0 0.0
        %954 = vmatpush1.msra.mxu0 0.0
        %955 = vmatprep.subr.mxu0 0.0
        %956 = vmatpush1.msra.mxu0 0.0
        %957 = vmatprep.subr.mxu0 0.0
        %958 = vmatpush1.msra.mxu0 0.0
        %959 = vmatprep.subr.mxu0 0.0
        %960 = vmatpush1.msra.mxu0 0.0
        %961 = vmatprep.subr.mxu0 0.0
        %962 = vmatpush1.msra.mxu0 0.0
        %963 = vmatprep.subr.mxu0 0.0
        %964 = vmatpush1.msra.mxu0 0.0
        %965 = vmatprep.subr.mxu0 0.0
        %966 = vmatpush1.msra.mxu0 0.0
        %967 = vmatprep.subr.mxu0 0.0
        %968 = vmatpush1.msra.mxu0 0.0
        %969 = vmatprep.subr.mxu0 0.0
        %970 = vmatpush1.msra.mxu0 0.0
        %971 = vmatprep.subr.mxu0 0.0
        %972 = vmatpush1.msra.mxu0 0.0
        %973 = vmatprep.mubr.f32.mxu0 0.0
        %974 = vmatmul.mubr.f32.gmra.mrb[0].mxu0 %v694
        %v975 = vpop.f32.mrb[0].mxu0
        %v976 = vadd.f32 %v815, %v975
        %v977 = vpop.f32.mrb[0].mxu0
        %v978 = vadd.f32 %v817, %v977
        %979 = vmatprep.mubr.f32.mxu0 0.0
        %980 = vmatmul.mubr.f32.gmra.mrb[0].mxu0 %v697
        %v981 = vpop.f32.mrb[0].mxu0
        %v982 = vadd.f32 %v821, %v981
        %v983 = vpop.f32.mrb[0].mxu0
        %v984 = vadd.f32 %v823, %v983
        %985 = vmatprep.mubr.f32.mxu0 0.0
        %986 = vmatmul.mubr.f32.gmra.mrb[0].mxu0 %v700
        %v987 = vpop.f32.mrb[0].mxu0
        %v988 = vadd.f32 %v827, %v987
        %v989 = vpop.f32.mrb[0].mxu0
        %v990 = vadd.f32 %v829, %v989
        %991 = vmatprep.mubr.f32.mxu0 0.0
        %992 = vmatmul.mubr.f32.gmra.mrb[0].mxu0 %v703
        %v993 = vpop.f32.mrb[0].mxu0
        %v994 = vadd.f32 %v833, %v993
        %v995 = vpop.f32.mrb[0].mxu0
        %v996 = vadd.f32 %v835, %v995
        %997 = vmatprep.mubr.f32.mxu0 0.0
        %998 = vmatmul.mubr.f32.gmra.mrb[0].mxu0 %v706
        %v999 = vpop.f32.mrb[0].mxu0
        %v1000 = vadd.f32 %v839, %v999
        %v1001 = vpop.f32.mrb[0].mxu0
        %v1002 = vadd.f32 %v841, %v1001
        %1003 = vmatprep.mubr.f32.mxu0 0.0
        %1004 = vmatmul.mubr.f32.gmra.mrb[0].mxu0 %v709
        %v1005 = vpop.f32.mrb[0].mxu0
        %v1006 = vadd.f32 %v845, %v1005
        %v1007 = vpop.f32.mrb[0].mxu0
        %v1008 = vadd.f32 %v847, %v1007
        %1009 = vmatprep.mubr.f32.mxu0 0.0
        %1010 = vmatmul.mubr.f32.gmra.mrb[0].mxu0 %v712
        %v1011 = vpop.f32.mrb[0].mxu0
        %v1012 = vadd.f32 %v851, %v1011
        %v1013 = vpop.f32.mrb[0].mxu0
        %v1014 = vadd.f32 %v853, %v1013
        %1015 = vmatprep.mubr.f32.mxu0 0.0
        %1016 = vmatmul.mubr.f32.gmra.mrb[0].mxu0 %v715
        %v1017 = vpop.f32.mrb[0].mxu0
        %v1018 = vadd.f32 %v857, %v1017
        %v1019 = vpop.f32.mrb[0].mxu0
        %v1020 = vadd.f32 %v859, %v1019
        %1021 = vmatprep.mubr.f32.mxu0 0.0
        %1022 = vmatmul.mubr.f32.gmra.mrb[0].mxu0 %v718
        %v1023 = vpop.f32.mrb[0].mxu0
        %v1024 = vadd.f32 %v863, %v1023
        %v1025 = vpop.f32.mrb[0].mxu0
        %v1026 = vadd.f32 %v865, %v1025
        %1027 = vmatprep.mubr.f32.mxu0 0.0
        %1028 = vmatmul.mubr.f32.gmra.mrb[0].mxu0 %v721
        %v1029 = vpop.f32.mrb[0].mxu0
        %v1030 = vadd.f32 %v869, %v1029
        %v1031 = vpop.f32.mrb[0].mxu0
        %v1032 = vadd.f32 %v871, %v1031
        %1033 = vmatprep.mubr.f32.mxu0 0.0
        %1034 = vmatmul.mubr.f32.gmra.mrb[0].mxu0 %v724
        %v1035 = vpop.f32.mrb[0].mxu0
        %v1036 = vadd.f32 %v875, %v1035
        %v1037 = vpop.f32.mrb[0].mxu0
        %v1038 = vadd.f32 %v877, %v1037
        %1039 = vmatprep.mubr.f32.mxu0 0.0
        %1040 = vmatmul.mubr.f32.gmra.mrb[0].mxu0 %v727
        %v1041 = vpop.f32.mrb[0].mxu0
        %v1042 = vadd.f32 %v881, %v1041
        %v1043 = vpop.f32.mrb[0].mxu0
        %v1044 = vadd.f32 %v883, %v1043
        %1045 = vmatprep.mubr.f32.mxu0 0.0
        %1046 = vmatmul.mubr.f32.gmra.mrb[0].mxu0 %v730
        %v1047 = vpop.f32.mrb[0].mxu0
        %v1048 = vadd.f32 %v887, %v1047
        %v1049 = vpop.f32.mrb[0].mxu0
        %v1050 = vadd.f32 %v889, %v1049
        %1051 = vmatprep.mubr.f32.mxu0 0.0
        %1052 = vmatmul.mubr.f32.gmra.mrb[0].mxu0 %v733
        %v1053 = vpop.f32.mrb[0].mxu0
        %v1054 = vadd.f32 %v893, %v1053
        %v1055 = vpop.f32.mrb[0].mxu0
        %v1056 = vadd.f32 %v895, %v1055
        %1057 = vmatprep.mubr.f32.mxu0 0.0
        %1058 = vmatmul.mubr.f32.gmra.mrb[0].mxu0 %v736
        %v1059 = vpop.f32.mrb[0].mxu0
        %v1060 = vadd.f32 %v899, %v1059
        %v1061 = vpop.f32.mrb[0].mxu0
        %v1062 = vadd.f32 %v901, %v1061
        %1063 = vmatprep.mubr.f32.mxu0 0.0
        %1064 = vmatmul.mubr.f32.gmra.mrb[0].mxu0 %v739
        %v1065 = vpop.f32.mrb[0].mxu0
        %v1066 = vadd.f32 %v905, %v1065
        %v1067 = vpop.f32.mrb[0].mxu0
        %v1068 = vadd.f32 %v907, %v1067
        %1069 = vdwg.mxu0
        %v1070 = vxor.u32 %v976, 2147483648
        %v1071 = vxor.u32 %v978, 2147483648
        %v1072 = vxor.u32 %v982, 2147483648
        %v1073 = vxor.u32 %v984, 2147483648
        %v1074 = vxor.u32 %v988, 2147483648
        %v1075 = vxor.u32 %v990, 2147483648
        %v1076 = vxor.u32 %v994, 2147483648
        %v1077 = vxor.u32 %v996, 2147483648
        %v1078 = vxor.u32 %v1000, 2147483648
        %v1079 = vxor.u32 %v1002, 2147483648
        %v1080 = vxor.u32 %v1006, 2147483648
        %v1081 = vxor.u32 %v1008, 2147483648
        %v1082 = vxor.u32 %v1012, 2147483648
        %v1083 = vxor.u32 %v1014, 2147483648
        %v1084 = vxor.u32 %v1018, 2147483648
        %v1085 = vxor.u32 %v1020, 2147483648
        %v1086 = vxor.u32 %v1024, 2147483648
        %v1087 = vxor.u32 %v1026, 2147483648
        %v1088 = vxor.u32 %v1030, 2147483648
        %v1089 = vxor.u32 %v1032, 2147483648
        %v1090 = vxor.u32 %v1036, 2147483648
        %v1091 = vxor.u32 %v1038, 2147483648
        %v1092 = vxor.u32 %v1042, 2147483648
        %v1093 = vxor.u32 %v1044, 2147483648
        %v1094 = vmul.f32 %v1070, 1.442695
        %v1095 = vpow.pop %v1094
        %v1096 = vmul.f32 %v1071, 1.442695
        %v1097 = vpow.pop %v1096
        %v1098 = vmul.f32 %v1072, 1.442695
        %v1099 = vpow.pop %v1098
        %v1100 = vmul.f32 %v1073, 1.442695
        %v1101 = vpow.pop %v1100
        %v1102 = vmul.f32 %v1074, 1.442695
        %v1103 = vpow.pop %v1102
        %v1104 = vmul.f32 %v1075, 1.442695
        %v1105 = vpow.pop %v1104
        %v1106 = vmul.f32 %v1076, 1.442695
        %v1107 = vpow.pop %v1106
        %v1108 = vmul.f32 %v1077, 1.442695
        %v1109 = vpow.pop %v1108
        %v1110 = vmul.f32 %v1078, 1.442695
        %v1111 = vpow.pop %v1110
        %v1112 = vmul.f32 %v1079, 1.442695
        %v1113 = vpow.pop %v1112
        %v1114 = vmul.f32 %v1080, 1.442695
        %v1115 = vpow.pop %v1114
        %v1116 = vmul.f32 %v1081, 1.442695
        %v1117 = vpow.pop %v1116
        %v1118 = vmul.f32 %v1082, 1.442695
        %v1119 = vpow.pop %v1118
        %v1120 = vmul.f32 %v1083, 1.442695
        %v1121 = vpow.pop %v1120
        %v1122 = vmul.f32 %v1084, 1.442695
        %v1123 = vpow.pop %v1122
        %v1124 = vmul.f32 %v1085, 1.442695
        %v1125 = vpow.pop %v1124
        %v1126 = vmul.f32 %v1086, 1.442695
        %v1127 = vpow.pop %v1126
        %v1128 = vmul.f32 %v1087, 1.442695
        %v1129 = vpow.pop %v1128
        %v1130 = vmul.f32 %v1088, 1.442695
        %v1131 = vpow.pop %v1130
        %v1132 = vmul.f32 %v1089, 1.442695
        %v1133 = vpow.pop %v1132
        %v1134 = vmul.f32 %v1090, 1.442695
        %v1135 = vpow.pop %v1134
        %v1136 = vmul.f32 %v1091, 1.442695
        %v1137 = vpow.pop %v1136
        %v1138 = vmul.f32 %v1092, 1.442695
        %v1139 = vpow.pop %v1138
        %v1140 = vmul.f32 %v1093, 1.442695
        %v1141 = vpow.pop %v1140
        %v1142 = vadd.f32 %v1095, 1.0
        %v1143 = vadd.f32 %v1097, 1.0
        %v1144 = vadd.f32 %v1099, 1.0
        %v1145 = vadd.f32 %v1101, 1.0
        %v1146 = vadd.f32 %v1103, 1.0
        %v1147 = vadd.f32 %v1105, 1.0
        %v1148 = vadd.f32 %v1107, 1.0
        %v1149 = vadd.f32 %v1109, 1.0
        %v1150 = vadd.f32 %v1111, 1.0
        %v1151 = vadd.f32 %v1113, 1.0
        %v1152 = vadd.f32 %v1115, 1.0
        %v1153 = vadd.f32 %v1117, 1.0
        %v1154 = vadd.f32 %v1119, 1.0
        %v1155 = vadd.f32 %v1121, 1.0
        %v1156 = vadd.f32 %v1123, 1.0
        %v1157 = vadd.f32 %v1125, 1.0
        %v1158 = vadd.f32 %v1127, 1.0
        %v1159 = vadd.f32 %v1129, 1.0
        %v1160 = vadd.f32 %v1131, 1.0
        %v1161 = vadd.f32 %v1133, 1.0
        %v1162 = vadd.f32 %v1135, 1.0
        %v1163 = vadd.f32 %v1137, 1.0
        %v1164 = vadd.f32 %v1139, 1.0
        %v1165 = vadd.f32 %v1141, 1.0
        %v1166 = vrcp.pop %v1142
        %v1167 = vmul.f32 1.0, %v1166
        %v1168 = vrcp.pop %v1143
        %v1169 = vmul.f32 1.0, %v1168
        %v1170 = vrcp.pop %v1144
        %v1171 = vmul.f32 1.0, %v1170
        %v1172 = vrcp.pop %v1145
        %v1173 = vmul.f32 1.0, %v1172
        %v1174 = vrcp.pop %v1146
        %v1175 = vmul.f32 1.0, %v1174
        %v1176 = vrcp.pop %v1147
        %v1177 = vmul.f32 1.0, %v1176
        %v1178 = vrcp.pop %v1148
        %v1179 = vmul.f32 1.0, %v1178
        %v1180 = vrcp.pop %v1149
        %v1181 = vmul.f32 1.0, %v1180
        %v1182 = vrcp.pop %v1150
        %v1183 = vmul.f32 1.0, %v1182
        %v1184 = vrcp.pop %v1151
        %v1185 = vmul.f32 1.0, %v1184
        %v1186 = vrcp.pop %v1152
        %v1187 = vmul.f32 1.0, %v1186
        %v1188 = vrcp.pop %v1153
        %v1189 = vmul.f32 1.0, %v1188
        %v1190 = vrcp.pop %v1154
        %v1191 = vmul.f32 1.0, %v1190
        %v1192 = vrcp.pop %v1155
        %v1193 = vmul.f32 1.0, %v1192
        %v1194 = vrcp.pop %v1156
        %v1195 = vmul.f32 1.0, %v1194
        %v1196 = vrcp.pop %v1157
        %v1197 = vmul.f32 1.0, %v1196
        %v1198 = vrcp.pop %v1158
        %v1199 = vmul.f32 1.0, %v1198
        %v1200 = vrcp.pop %v1159
        %v1201 = vmul.f32 1.0, %v1200
        %v1202 = vrcp.pop %v1160
        %v1203 = vmul.f32 1.0, %v1202
        %v1204 = vrcp.pop %v1161
        %v1205 = vmul.f32 1.0, %v1204
        %v1206 = vrcp.pop %v1162
        %v1207 = vmul.f32 1.0, %v1206
        %v1208 = vrcp.pop %v1163
        %v1209 = vmul.f32 1.0, %v1208
        %v1210 = vrcp.pop %v1164
        %v1211 = vmul.f32 1.0, %v1210
        %v1212 = vrcp.pop %v1165
        %v1213 = vmul.f32 1.0, %v1212
        %v1214 = vtanh.pop %v1048
        %v1215 = vtanh.pop %v1050
        %v1216 = vtanh.pop %v1054
        %v1217 = vtanh.pop %v1056
        %v1218 = vtanh.pop %v1060
        %v1219 = vtanh.pop %v1062
        %v1220 = vtanh.pop %v1066
        %v1221 = vtanh.pop %v1068
        %v1222 = vld [vmem:[%s430] sm:$0xff]
        %v1223 = vld [vmem:[%s430 + $0x8] sm:$0xff]
        %v1224 = vld [vmem:[%s430 + $0x10] sm:$0xff]
        %v1225 = vld [vmem:[%s430 + $0x18] sm:$0xff]
        %v1226 = vld [vmem:[%s430 + $0x20] sm:$0xff]
        %v1227 = vld [vmem:[%s430 + $0x28] sm:$0xff]
        %v1228 = vld [vmem:[%s430 + $0x30] sm:$0xff]
        %v1229 = vld [vmem:[%s430 + $0x38] sm:$0xff]
        %v1230 = vmul.f32 %v1183, %v1222
        %v1231 = vmul.f32 %v1185, %v1223
        %v1232 = vmul.f32 %v1187, %v1224
        %v1233 = vmul.f32 %v1189, %v1225
        %v1234 = vmul.f32 %v1191, %v1226
        %v1235 = vmul.f32 %v1193, %v1227
        %v1236 = vmul.f32 %v1195, %v1228
        %v1237 = vmul.f32 %v1197, %v1229
        %v1238 = vmul.f32 %v1167, %v1214
        %v1239 = vmul.f32 %v1169, %v1215
        %v1240 = vmul.f32 %v1171, %v1216
        %v1241 = vmul.f32 %v1173, %v1217
        %v1242 = vmul.f32 %v1175, %v1218
        %v1243 = vmul.f32 %v1177, %v1219
        %v1244 = vmul.f32 %v1179, %v1220
        %v1245 = vmul.f32 %v1181, %v1221
        %v1246 = vadd.f32 %v1230, %v1238
        %v1247 = vadd.f32 %v1231, %v1239
        %v1248 = vadd.f32 %v1232, %v1240
        %v1249 = vadd.f32 %v1233, %v1241
        %v1250 = vadd.f32 %v1234, %v1242
        %v1251 = vadd.f32 %v1235, %v1243
        %v1252 = vadd.f32 %v1236, %v1244
        %v1253 = vadd.f32 %v1237, %v1245
        %v1254 = vtanh.pop %v1246
        %v1255 = vtanh.pop %v1247
        %v1256 = vtanh.pop %v1248
        %v1257 = vtanh.pop %v1249
        %v1258 = vtanh.pop %v1250
        %v1259 = vtanh.pop %v1251
        %v1260 = vtanh.pop %v1252
        %v1261 = vtanh.pop %v1253
        %v1262 = vmul.f32 %v1199, %v1254
        %v1263 = vmul.f32 %v1201, %v1255
        %v1264 = vmul.f32 %v1203, %v1256
        %v1265 = vmul.f32 %v1205, %v1257
        %v1266 = vmul.f32 %v1207, %v1258
        %v1267 = vmul.f32 %v1209, %v1259
        %v1268 = vmul.f32 %v1211, %v1260
        %v1269 = vmul.f32 %v1213, %v1261
        %1270 = vst [vmem:[%s461] sm:$0xff] %v1246
        %1271 = vst [vmem:[%s461 + $0x8] sm:$0xff] %v1247
        %1272 = vst [vmem:[%s461 + $0x10] sm:$0xff] %v1248
        %1273 = vst [vmem:[%s461 + $0x18] sm:$0xff] %v1249
        %1274 = vst [vmem:[%s461 + $0x20] sm:$0xff] %v1250
        %1275 = vst [vmem:[%s461 + $0x28] sm:$0xff] %v1251
        %1276 = vst [vmem:[%s461 + $0x30] sm:$0xff] %v1252
        %1277 = vst [vmem:[%s461 + $0x38] sm:$0xff] %v1253
        %1278 = vst [vmem:[%s455] sm:$0xff] %v1262
        %1279 = vst [vmem:[%s455 + $0x8] sm:$0xff] %v1263
        %1280 = vst [vmem:[%s455 + $0x10] sm:$0xff] %v1264
        %1281 = vst [vmem:[%s455 + $0x18] sm:$0xff] %v1265
        %1282 = vst [vmem:[%s455 + $0x20] sm:$0xff] %v1266
        %1283 = vst [vmem:[%s455 + $0x28] sm:$0xff] %v1267
        %1284 = vst [vmem:[%s455 + $0x30] sm:$0xff] %v1268
        %1285 = vst [vmem:[%s455 + $0x38] sm:$0xff] %v1269
        %s1286 = sand.u32 %s119, 1
        %s1287 = sand.u32 %s119, 1
        %s1288 = smul.addr %s1287, 64
        %s1289 = scalar_lea.vmem [#allocation4], %s1288
        %s1290 = sand.u32 %s145, 1
        %s1291 = sand.u32 %s145, 1
        %s1292 = smul.addr %s1291, 64
        %s1293 = scalar_lea.vmem [#allocation5], %s1292
        // Predicated region
        $region83: #{convlstm_cell.1} parent=73 // pred_check
          %p1294 = pneg %p129
        $region84: #{convlstm_cell.1} parent=73 // pred_check_branch
          %1296 = sbr.rel (%p1294) target = $region86
        $region85: #{convlstm_cell.1} parent=73 // pred_region
          %s1297 = smul.u32 2, %s17
          %s1298 = smul.addr %s1297, 8
          %s1299 = scalar_lea.vmem %s4, %s1298
          // Predicated region
          $region87: #{convlstm_cell.1} parent=85 // pred_check
            _
          $region88: #{convlstm_cell.1} parent=85 // pred_check_branch
            %1301 = sbr.rel (0) target = $region90
          $region89: #{convlstm_cell.1} parent=85 // pred_region
            // Predicated region
            $region91: #{convlstm_cell.1} parent=89 // pred_check
              _
            $region92: #{convlstm_cell.1} parent=89 // pred_check_branch
              %1303 = sbr.rel (0) target = $region94
            $region93: #{convlstm_cell.1} parent=89 // pred_region
              loop: start=0, step=1, limit=1
              $region95: #{convlstm_cell.1} parent=93 // loop_pre_header
                _
              $region96: #{convlstm_cell.1} parent=93 // loop_header
                %s1305 = sphi 0, %s1309
                %p1306 = scmp.ge.s32.totalorder %s1305, 1
                %s1310 = sphi %s1289, %s1289
                %s1311 = sphi %s1299, %s1299
              $region97: #{convlstm_cell.1} parent=93 // loop_header_branch
                %1308 = sbr.rel (%p1306) target = $region101
              $region98: #{convlstm_cell.1} parent=93 // loop_body
                %v1312 = vld [vmem:[%s1310] sm:$0xff]
                %1313 = vst [vmem:[%s1311] sm:$0xff] %v1312
                %v1314 = vld [vmem:[%s1310 + $0x8] sm:$0xff]
                %1315 = vst [vmem:[%s1311 + $0x8] sm:$0xff] %v1314
                %v1316 = vld [vmem:[%s1310 + $0x10] sm:$0xff]
                %1317 = vst [vmem:[%s1311 + $0x20] sm:$0xff] %v1316
                %v1318 = vld [vmem:[%s1310 + $0x18] sm:$0xff]
                %1319 = vst [vmem:[%s1311 + $0x28] sm:$0xff] %v1318
                %v1320 = vld [vmem:[%s1310 + $0x20] sm:$0xff]
                %1321 = vst [vmem:[%s1311 + $0x40] sm:$0xff] %v1320
                %v1322 = vld [vmem:[%s1310 + $0x28] sm:$0xff]
                %1323 = vst [vmem:[%s1311 + $0x48] sm:$0xff] %v1322
                %v1324 = vld [vmem:[%s1310 + $0x30] sm:$0xff]
                %1325 = vst [vmem:[%s1311 + $0x60] sm:$0xff] %v1324
                %v1326 = vld [vmem:[%s1310 + $0x38] sm:$0xff]
                %1327 = vst [vmem:[%s1311 + $0x68] sm:$0xff] %v1326
              $region99: #{convlstm_cell.1} parent=93 // loop_footer
                %s1309 = sadd.s32 1, %s1305
              $region100: #{convlstm_cell.1} parent=93 // loop_footer_branch
                %1304 = sbr.rel target = $region96
              $region101: #{convlstm_cell.1} parent=93 // loop_exit
                _
            $region94: #{convlstm_cell.1} parent=89 // pred_fallthru
              _
            // Predicated region
            $region102: #{convlstm_cell.1} parent=89 // pred_check
              _
            $region103: #{convlstm_cell.1} parent=89 // pred_check_branch
              %1329 = sbr.rel target = $region105
            $region104: #{convlstm_cell.1} parent=89 // pred_region
              _
            $region105: #{convlstm_cell.1} parent=89 // pred_fallthru
              _
          $region90: #{convlstm_cell.1} parent=85 // pred_fallthru
            _
          %1330 = vnop
        $region86: #{convlstm_cell.1} parent=73 // pred_fallthru
          _
        // Predicated region
        $region106: #{convlstm_cell.1} parent=73 // pred_check
          %p1331 = pneg %p155
        $region107: #{convlstm_cell.1} parent=73 // pred_check_branch
          %1333 = sbr.rel (%p1331) target = $region109
        $region108: #{convlstm_cell.1} parent=73 // pred_region
          %s1334 = smul.u32 2, %s17
          %s1335 = smul.addr %s1334, 8
          %s1336 = scalar_lea.vmem %s5, %s1335
          // Predicated region
          $region110: #{convlstm_cell.1} parent=108 // pred_check
            _
          $region111: #{convlstm_cell.1} parent=108 // pred_check_branch
            %1338 = sbr.rel (0) target = $region113
          $region112: #{convlstm_cell.1} parent=108 // pred_region
            // Predicated region
            $region114: #{convlstm_cell.1} parent=112 // pred_check
              _
            $region115: #{convlstm_cell.1} parent=112 // pred_check_branch
              %1340 = sbr.rel (0) target = $region117
            $region116: #{convlstm_cell.1} parent=112 // pred_region
              loop: start=0, step=1, limit=1
              $region118: #{convlstm_cell.1} parent=116 // loop_pre_header
                _
              $region119: #{convlstm_cell.1} parent=116 // loop_header
                %s1342 = sphi 0, %s1346
                %p1343 = scmp.ge.s32.totalorder %s1342, 1
                %s1347 = sphi %s1293, %s1293
                %s1348 = sphi %s1336, %s1336
              $region120: #{convlstm_cell.1} parent=116 // loop_header_branch
                %1345 = sbr.rel (%p1343) target = $region124
              $region121: #{convlstm_cell.1} parent=116 // loop_body
                %v1349 = vld [vmem:[%s1347] sm:$0xff]
                %1350 = vst [vmem:[%s1348] sm:$0xff] %v1349
                %v1351 = vld [vmem:[%s1347 + $0x8] sm:$0xff]
                %1352 = vst [vmem:[%s1348 + $0x8] sm:$0xff] %v1351
                %v1353 = vld [vmem:[%s1347 + $0x10] sm:$0xff]
                %1354 = vst [vmem:[%s1348 + $0x20] sm:$0xff] %v1353
                %v1355 = vld [vmem:[%s1347 + $0x18] sm:$0xff]
                %1356 = vst [vmem:[%s1348 + $0x28] sm:$0xff] %v1355
                %v1357 = vld [vmem:[%s1347 + $0x20] sm:$0xff]
                %1358 = vst [vmem:[%s1348 + $0x40] sm:$0xff] %v1357
                %v1359 = vld [vmem:[%s1347 + $0x28] sm:$0xff]
                %1360 = vst [vmem:[%s1348 + $0x48] sm:$0xff] %v1359
                %v1361 = vld [vmem:[%s1347 + $0x30] sm:$0xff]
                %1362 = vst [vmem:[%s1348 + $0x60] sm:$0xff] %v1361
                %v1363 = vld [vmem:[%s1347 + $0x38] sm:$0xff]
                %1364 = vst [vmem:[%s1348 + $0x68] sm:$0xff] %v1363
              $region122: #{convlstm_cell.1} parent=116 // loop_footer
                %s1346 = sadd.s32 1, %s1342
              $region123: #{convlstm_cell.1} parent=116 // loop_footer_branch
                %1341 = sbr.rel target = $region119
              $region124: #{convlstm_cell.1} parent=116 // loop_exit
                _
            $region117: #{convlstm_cell.1} parent=112 // pred_fallthru
              _
            // Predicated region
            $region125: #{convlstm_cell.1} parent=112 // pred_check
              _
            $region126: #{convlstm_cell.1} parent=112 // pred_check_branch
              %1366 = sbr.rel target = $region128
            $region127: #{convlstm_cell.1} parent=112 // pred_region
              _
            $region128: #{convlstm_cell.1} parent=112 // pred_fallthru
              _
          $region113: #{convlstm_cell.1} parent=108 // pred_fallthru
            _
          %1367 = vnop
        $region109: #{convlstm_cell.1} parent=73 // pred_fallthru
          _
      $region74: #{convlstm_cell.1} parent=5 // pred_fallthru
        _
      %p1368 = scmp.le.s32.totalorder 2, %s12
      // Predicated region
      $region129: #{convlstm_cell.1} parent=5 // pred_check
        %p1369 = pneg %p1368
      $region130: #{convlstm_cell.1} parent=5 // pred_check_branch
        %1371 = sbr.rel (%p1369) target = $region132
      $region131: #{convlstm_cell.1} parent=5 // pred_region
        %s1372 = ssub.s32 %s12, 2
        // Predicated region
        $region133: #{convlstm_cell.1} parent=131 // pred_check
          %p1373 = pneg %p135
        $region134: #{convlstm_cell.1} parent=131 // pred_check_branch
          %1375 = sbr.rel (%p1373) target = $region136
        $region135: #{convlstm_cell.1} parent=131 // pred_region
          %s1376 = sand.u32 %s120, 1
          %s1377 = sand.u32 %s120, 1
          %s1378 = smul.addr %s1377, 64
          %s1379 = scalar_lea.vmem [#allocation4], %s1378
        $region136: #{convlstm_cell.1} parent=131 // pred_fallthru
          _
        // Predicated region
        $region137: #{convlstm_cell.1} parent=131 // pred_check
          %p1380 = pneg %p161
        $region138: #{convlstm_cell.1} parent=131 // pred_check_branch
          %1382 = sbr.rel (%p1380) target = $region140
        $region139: #{convlstm_cell.1} parent=131 // pred_region
          %s1383 = sand.u32 %s146, 1
          %s1384 = sand.u32 %s146, 1
          %s1385 = smul.addr %s1384, 64
          %s1386 = scalar_lea.vmem [#allocation5], %s1385
        $region140: #{convlstm_cell.1} parent=131 // pred_fallthru
          _
      $region132: #{convlstm_cell.1} parent=5 // pred_fallthru
        _
    $region6: #{convlstm_cell.1} parent=1 // loop_footer
      %s16 = sadd.s32 1, %s12
    $region7: #{convlstm_cell.1} parent=1 // loop_footer_branch
      %11 = sbr.rel target = $region3
    $region8: #{convlstm_cell.1} parent=1 // loop_exit
      _

</llo_original>
